<compile_context>
chip_gen: v7x
topology: tpu7x:2x2x1
jax: 0.10.0
libtpu: 0.0.40
codegen_flags: <defaults>
</compile_context>

<pallas_src>
import functools

import jax
import jax.numpy as jnp
from jax.experimental import pallas as pl
from jax.experimental.pallas import tpu as pltpu

KH = KW = 3  # kernel_size = 3, stride = 1, padding = dilation = 1


def _conv3x3_lane_dense(x_img, w_ref, xext_ref, patches_ref, H, W):
    """3x3/s1/p1 convolution of one image in the flattened, lane-dense layout.

    x_img:       (Cin, H*W) f32 value  — spatial dims flattened row-major (lane axis).
    w_ref:       (Cout, KH*KW*Cin) ref — column order (kh, kw, ci).
    xext_ref:    (Cin, H*W + 2*(W+1)) f32 VMEM scratch — zero-haloed flat image.
    patches_ref: (KH*KW*Cin, H*W) f32 VMEM scratch — im2col matrix.
    Returns (Cout, H*W) f32.
    """
    Cin, HW = x_img.shape
    pad = W + 1

    # Zero halo in flat coordinates handles the vertical (h) out-of-bounds taps; only the
    # horizontal wrap at row edges needs masking below.
    xext_ref[...] = jnp.zeros(xext_ref.shape, jnp.float32)
    xext_ref[:, pad:pad + HW] = x_img

    # Lane index -> w coordinate (2-D iota; TPU needs >= 2-D), for the wrap mask.
    ww = jax.lax.broadcasted_iota(jnp.int32, (1, HW), 1) % W

    for kh in range(KH):
        for kw in range(KW):
            dh, dw = kh - 1, kw - 1
            start = pad + dh * W + dw
            tap = xext_ref[:, start:start + HW]          # pure lane shift, no reshape
            if dw != 0:
                valid = (ww + dw >= 0) & (ww + dw < W)   # mask horizontal wraparound
                tap = jnp.where(valid, tap, 0.0)
            t = kh * KW + kw
            patches_ref[t * Cin:(t + 1) * Cin, :] = tap  # stage im2col rows in VMEM

    # One MXU call with K = KH*KW*Cin (instead of 9 matmuls with K = Cin).
    return jnp.dot(w_ref[...], patches_ref[...], preferred_element_type=jnp.float32)


def _conv_stats_kernel(x_ref, w_ref, sum_ref, sqsum_ref, xext_ref, patches_ref, *, H, W):
    # x_ref: (1, Cin, H*W); sum_ref / sqsum_ref: (1, Cout, 1)
    y = _conv3x3_lane_dense(x_ref[0].astype(jnp.float32), w_ref, xext_ref, patches_ref, H, W)
    s = jnp.sum(y, axis=1, keepdims=True)        # (Cout, 1)
    q = jnp.sum(y * y, axis=1, keepdims=True)    # (Cout, 1)
    sum_ref[...] = s.reshape((1,) + s.shape)
    sqsum_ref[...] = q.reshape((1,) + q.shape)


def _conv_bn_relu_kernel(x_ref, w_ref, scale_ref, shift_ref, out_ref, xext_ref, patches_ref,
                         *, H, W):
    # x_ref: (1, Cin, H*W); scale/shift: (Cout, 1); out_ref: (1, Cout, H*W) — lane dense.
    y = _conv3x3_lane_dense(x_ref[0].astype(jnp.float32), w_ref, xext_ref, patches_ref, H, W)
    z = y * scale_ref[...] + shift_ref[...]
    out_ref[...] = jnp.maximum(z, 0.0).astype(out_ref.dtype).reshape((1,) + z.shape)


def conv_bnr(x_nchw, weight_oihw, gamma, beta, eps=1e-5):
    """ConvBNR forward (training-mode BatchNorm, like a fresh PyTorch module)."""
    N, Cin, H, W = x_nchw.shape
    Cout = weight_oihw.shape[0]
    HW = H * W
    K = KH * KW * Cin

    # Free row-major reshape: (N, Cin, H, W) == (N, Cin, H*W).  No transpose / pad pass.
    x_flat = x_nchw.astype(jnp.float32).reshape(N, Cin, HW)
    # (Cout, Cin, KH, KW) -> (Cout, KH*KW*Cin), column order (kh, kw, ci) matching the
    # in-kernel im2col row order.  Tiny array; negligible wrapper work.
    wmat = jnp.transpose(weight_oihw.astype(jnp.float32), (0, 2, 3, 1)).reshape(Cout, K)

    compiler_params = pltpu.CompilerParams(
        dimension_semantics=("parallel",),      # batch elements are independent (v7x: 2 TCs)
        vmem_limit_bytes=32 * 1024 * 1024,      # explicit scoped-VMEM budget for these tiles
    )
    scratch = [
        pltpu.VMEM((Cin, HW + 2 * (W + 1)), jnp.float32),  # zero-haloed flat image
        pltpu.VMEM((K, HW), jnp.float32),                  # im2col staging buffer
    ]

    # ---- Pass 1: conv -> per-batch channel sum / sum-of-squares (BN batch statistics).
    csum, csqsum = pl.pallas_call(
        functools.partial(_conv_stats_kernel, H=H, W=W),
        out_shape=(
            jax.ShapeDtypeStruct((N, Cout, 1), jnp.float32),
            jax.ShapeDtypeStruct((N, Cout, 1), jnp.float32),
        ),
        grid=(N,),
        in_specs=[
            pl.BlockSpec((1, Cin, HW), lambda b: (b, 0, 0)),
            pl.BlockSpec((Cout, K), lambda b: (0, 0)),
        ],
        out_specs=(
            pl.BlockSpec((1, Cout, 1), lambda b: (b, 0, 0)),
            pl.BlockSpec((1, Cout, 1), lambda b: (b, 0, 0)),
        ),
        scratch_shapes=scratch,
        compiler_params=compiler_params,
    )(x_flat, wmat)

    # BatchNorm training-mode statistics (biased variance, as PyTorch uses to normalize).
    count = N * H * W
    mean = jnp.sum(csum, axis=0)[:, 0] / count                    # (Cout,)
    var = jnp.sum(csqsum, axis=0)[:, 0] / count - mean * mean     # (Cout,)
    var = jnp.maximum(var, 0.0)        # guard against cancellation pushing var negative
    scale = gamma.astype(jnp.float32) / jnp.sqrt(var + eps)
    shift = beta.astype(jnp.float32) - mean * scale

    # ---- Pass 2: recompute the conv and fuse BN affine + ReLU, writing the final NCHW
    # output directly (no conv intermediate in HBM, no trailing transpose pass).
    out_flat = pl.pallas_call(
        functools.partial(_conv_bn_relu_kernel, H=H, W=W),
        out_shape=jax.ShapeDtypeStruct((N, Cout, HW), jnp.float32),
        grid=(N,),
        in_specs=[
            pl.BlockSpec((1, Cin, HW), lambda b: (b, 0, 0)),
            pl.BlockSpec((Cout, K), lambda b: (0, 0)),
            pl.BlockSpec((Cout, 1), lambda b: (0, 0)),
            pl.BlockSpec((Cout, 1), lambda b: (0, 0)),
        ],
        out_specs=pl.BlockSpec((1, Cout, HW), lambda b: (b, 0, 0)),
        scratch_shapes=scratch,
        compiler_params=compiler_params,
    )(x_flat, wmat, scale.reshape(Cout, 1), shift.reshape(Cout, 1))

    # Row-major (N, Cout, H*W) == (N, Cout, H, W): metadata-only reshape.
    return out_flat.reshape(N, Cout, H, W)


def _reference(x_nchw, weight_oihw, gamma, beta, eps=1e-5):
    """Pure-JAX reference: Conv2d(3x3, s1, p1, no bias) + BatchNorm(train) + ReLU."""
    y = jax.lax.conv_general_dilated(
        x_nchw, weight_oihw, window_strides=(1, 1), padding=((1, 1), (1, 1)),
        dimension_numbers=("NCHW", "OIHW", "NCHW"))
    mean = jnp.mean(y, axis=(0, 2, 3), keepdims=True)
    var = jnp.mean((y - mean) ** 2, axis=(0, 2, 3), keepdims=True)
    yn = (y - mean) / jnp.sqrt(var + eps)
    yn = yn * gamma.reshape(1, -1, 1, 1) + beta.reshape(1, -1, 1, 1)
    return jnp.maximum(yn, 0.0)


if __name__ == "__main__":
    # Small shapes consistent with the module (NCHW input).
    N, Cin, H, W = 2, 4, 16, 16
    Cout = 8

    key = jax.random.PRNGKey(0)
    kx, kwt, kg, kb = jax.random.split(key, 4)
    x = jax.random.normal(kx, (N, Cin, H, W), dtype=jnp.float32)
    weight = 0.1 * jax.random.normal(kwt, (Cout, Cin, KH, KW), dtype=jnp.float32)
    gamma = 1.0 + 0.1 * jax.random.normal(kg, (Cout,), dtype=jnp.float32)
    beta = 0.1 * jax.random.normal(kb, (Cout,), dtype=jnp.float32)

    out = jax.block_until_ready(jax.jit(conv_bnr)(x, weight, gamma, beta))
    ref = jax.block_until_ready(_reference(x, weight, gamma, beta))

    assert out.shape == (N, Cout, H, W)
    if not jnp.allclose(out, ref, atol=1e-4, rtol=1e-4):
        max_err = jnp.max(jnp.abs(out - ref))
        raise AssertionError(
            f"Pallas ConvBNR mismatch vs JAX reference (max abs err={max_err})")

    # TODO(synk): BatchNorm2d running_mean/running_var buffer updates (training side
    # effect that does not change this forward output) are not emitted.
    print("KERNEL_OK")
</pallas_src>

<mosaic_0001>
module attributes {stable_mosaic.version = 11 : i64} {
  func.func @_conv_stats_kernel(%arg0: i32, %arg1: memref<1x4x256xf32, #tpu.memory_space<vmem>>, %arg2: memref<8x36xf32, #tpu.memory_space<vmem>>, %arg3: memref<1x8x1xf32, #tpu.memory_space<vmem>>, %arg4: memref<1x8x1xf32, #tpu.memory_space<vmem>>, %arg5: memref<4x290xf32, #tpu.memory_space<vmem>>, %arg6: memref<36x256xf32, #tpu.memory_space<vmem>>) attributes {dimension_semantics = [#tpu.dimension_semantics<parallel>], iteration_bounds = array<i64: 2>, scalar_prefetch = 0 : i64, scratch_operands = 2 : i64, tpu.core_type = #tpu.core_type<tc>, window_params = [{transform_indices = @transform_0, window_bounds = array<i64: 1, 4, 256>}, {pipeline_mode = #tpu.pipeline_mode<synchronous>, transform_indices = @transform_1, window_bounds = array<i64: 8, 36>}, {transform_indices = @transform_2, window_bounds = array<i64: 1, 8, 1>}, {transform_indices = @transform_3, window_bounds = array<i64: 1, 8, 1>}]} {
    %c0 = arith.constant 0 : index
    %c0_0 = arith.constant 0 : index
    %c0_1 = arith.constant 0 : index
    %0 = vector.load %arg1[%c0, %c0_0, %c0_1] : memref<1x4x256xf32, #tpu.memory_space<vmem>>, vector<1x4x256xf32>
    %1 = vector.shape_cast %0 : vector<1x4x256xf32> to vector<4x256xf32>
    %cst = arith.constant 0.000000e+00 : f32
    %2 = vector.broadcast %cst : f32 to vector<4x290xf32>
    %c0_2 = arith.constant 0 : index
    %c0_3 = arith.constant 0 : index
    %3 = vector.load %arg5[%c0_2, %c0_3] : memref<4x290xf32, #tpu.memory_space<vmem>>, vector<4x290xf32>
    tpu.vector_store %arg5[%c0_2, %c0_3], %2 {strides = array<i32>} : memref<4x290xf32, #tpu.memory_space<vmem>>, vector<4x290xf32>,
    %c0_4 = arith.constant 0 : index
    %c17 = arith.constant 17 : index
    %4 = vector.load %arg5[%c0_4, %c17] : memref<4x290xf32, #tpu.memory_space<vmem>>, vector<4x256xf32>
    tpu.vector_store %arg5[%c0_4, %c17], %1 {strides = array<i32>} : memref<4x290xf32, #tpu.memory_space<vmem>>, vector<4x256xf32>,
    %5 = tpu.iota {dimensions = array<i32: 1>} : vector<1x256xi32>
    %c16_i32 = arith.constant 16 : i32
    %c0_i32 = arith.constant 0 : i32
    %6 = arith.cmpi eq, %c16_i32, %c0_i32 : i32
    %c1_i32 = arith.constant 1 : i32
    %7 = arith.select %6, %c1_i32, %c16_i32 : i32
    %8 = vector.broadcast %7 : i32 to vector<1x256xi32>
    %9 = arith.remsi %5, %8 : vector<1x256xi32>
    %c0_i32_5 = arith.constant 0 : i32
    %10 = vector.broadcast %c0_i32_5 : i32 to vector<1x256xi32>
    %11 = arith.cmpi ne, %9, %10 : vector<1x256xi32>
    %c0_i32_6 = arith.constant 0 : i32
    %12 = vector.broadcast %c0_i32_6 : i32 to vector<1x256xi32>
    %13 = arith.cmpi slt, %9, %12 : vector<1x256xi32>
    %c0_i32_7 = arith.constant 0 : i32
    %14 = arith.cmpi slt, %7, %c0_i32_7 : i32
    %15 = vector.broadcast %14 : i1 to vector<1x256xi1>
    %16 = vector.broadcast %15 : vector<1x256xi1> to vector<1x256xi1>
    %17 = arith.xori %13, %16 : vector<1x256xi1>
    %18 = arith.andi %17, %11 : vector<1x256xi1>
    %19 = vector.broadcast %7 : i32 to vector<1x256xi32>
    %20 = arith.addi %9, %19 : vector<1x256xi32>
    %21 = arith.select %18, %20, %9 : vector<1x256xi1>, vector<1x256xi32>
    %c0_8 = arith.constant 0 : index
    %c0_9 = arith.constant 0 : index
    %22 = vector.load %arg5[%c0_8, %c0_9] : memref<4x290xf32, #tpu.memory_space<vmem>>, vector<4x256xf32>
    %c-1_i32 = arith.constant -1 : i32
    %23 = vector.broadcast %c-1_i32 : i32 to vector<1x256xi32>
    %24 = arith.addi %21, %23 : vector<1x256xi32>
    %c0_i32_10 = arith.constant 0 : i32
    %25 = vector.broadcast %c0_i32_10 : i32 to vector<1x256xi32>
    %26 = arith.cmpi sge, %24, %25 : vector<1x256xi32>
    %c-1_i32_11 = arith.constant -1 : i32
    %27 = vector.broadcast %c-1_i32_11 : i32 to vector<1x256xi32>
    %28 = arith.addi %21, %27 : vector<1x256xi32>
    %c16_i32_12 = arith.constant 16 : i32
    %29 = vector.broadcast %c16_i32_12 : i32 to vector<1x256xi32>
    %30 = arith.cmpi slt, %28, %29 : vector<1x256xi32>
    %31 = arith.andi %26, %30 : vector<1x256xi1>
    %cst_13 = arith.constant 0.000000e+00 : f32
    %32 = vector.shape_cast %31 : vector<1x256xi1> to vector<1x256xi1>
    %33 = vector.broadcast %32 : vector<1x256xi1> to vector<4x256xi1>
    %34 = vector.broadcast %cst_13 : f32 to vector<4x256xf32>
    %35 = arith.select %33, %22, %34 : vector<4x256xi1>, vector<4x256xf32>
    %c0_14 = arith.constant 0 : index
    %c0_15 = arith.constant 0 : index
    %36 = vector.load %arg6[%c0_14, %c0_15] : memref<36x256xf32, #tpu.memory_space<vmem>>, vector<4x256xf32>
    tpu.vector_store %arg6[%c0_14, %c0_15], %35 {strides = array<i32>} : memref<36x256xf32, #tpu.memory_space<vmem>>, vector<4x256xf32>,
    %c0_16 = arith.constant 0 : index
    %c1 = arith.constant 1 : index
    %37 = vector.load %arg5[%c0_16, %c1] : memref<4x290xf32, #tpu.memory_space<vmem>>, vector<4x256xf32>
    %c4 = arith.constant 4 : index
    %c0_17 = arith.constant 0 : index
    %38 = vector.load %arg6[%c4, %c0_17] : memref<36x256xf32, #tpu.memory_space<vmem>>, vector<4x256xf32>
    tpu.vector_store %arg6[%c4, %c0_17], %37 {strides = array<i32>} : memref<36x256xf32, #tpu.memory_space<vmem>>, vector<4x256xf32>,
    %c0_18 = arith.constant 0 : index
    %c2 = arith.constant 2 : index
    %39 = vector.load %arg5[%c0_18, %c2] : memref<4x290xf32, #tpu.memory_space<vmem>>, vector<4x256xf32>
    %c1_i32_19 = arith.constant 1 : i32
    %40 = vector.broadcast %c1_i32_19 : i32 to vector<1x256xi32>
    %41 = arith.addi %21, %40 : vector<1x256xi32>
    %c0_i32_20 = arith.constant 0 : i32
    %42 = vector.broadcast %c0_i32_20 : i32 to vector<1x256xi32>
    %43 = arith.cmpi sge, %41, %42 : vector<1x256xi32>
    %c1_i32_21 = arith.constant 1 : i32
    %44 = vector.broadcast %c1_i32_21 : i32 to vector<1x256xi32>
    %45 = arith.addi %21, %44 : vector<1x256xi32>
    %c16_i32_22 = arith.constant 16 : i32
    %46 = vector.broadcast %c16_i32_22 : i32 to vector<1x256xi32>
    %47 = arith.cmpi slt, %45, %46 : vector<1x256xi32>
    %48 = arith.andi %43, %47 : vector<1x256xi1>
    %cst_23 = arith.constant 0.000000e+00 : f32
    %49 = vector.shape_cast %48 : vector<1x256xi1> to vector<1x256xi1>
    %50 = vector.broadcast %49 : vector<1x256xi1> to vector<4x256xi1>
    %51 = vector.broadcast %cst_23 : f32 to vector<4x256xf32>
    %52 = arith.select %50, %39, %51 : vector<4x256xi1>, vector<4x256xf32>
    %c8 = arith.constant 8 : index
    %c0_24 = arith.constant 0 : index
    %53 = vector.load %arg6[%c8, %c0_24] : memref<36x256xf32, #tpu.memory_space<vmem>>, vector<4x256xf32>
    tpu.vector_store %arg6[%c8, %c0_24], %52 {strides = array<i32>} : memref<36x256xf32, #tpu.memory_space<vmem>>, vector<4x256xf32>,
    %c0_25 = arith.constant 0 : index
    %c16 = arith.constant 16 : index
    %54 = vector.load %arg5[%c0_25, %c16] : memref<4x290xf32, #tpu.memory_space<vmem>>, vector<4x256xf32>
    %c-1_i32_26 = arith.constant -1 : i32
    %55 = vector.broadcast %c-1_i32_26 : i32 to vector<1x256xi32>
    %56 = arith.addi %21, %55 : vector<1x256xi32>
    %c0_i32_27 = arith.constant 0 : i32
    %57 = vector.broadcast %c0_i32_27 : i32 to vector<1x256xi32>
    %58 = arith.cmpi sge, %56, %57 : vector<1x256xi32>
    %c-1_i32_28 = arith.constant -1 : i32
    %59 = vector.broadcast %c-1_i32_28 : i32 to vector<1x256xi32>
    %60 = arith.addi %21, %59 : vector<1x256xi32>
    %c16_i32_29 = arith.constant 16 : i32
    %61 = vector.broadcast %c16_i32_29 : i32 to vector<1x256xi32>
    %62 = arith.cmpi slt, %60, %61 : vector<1x256xi32>
    %63 = arith.andi %58, %62 : vector<1x256xi1>
    %cst_30 = arith.constant 0.000000e+00 : f32
    %64 = vector.shape_cast %63 : vector<1x256xi1> to vector<1x256xi1>
    %65 = vector.broadcast %64 : vector<1x256xi1> to vector<4x256xi1>
    %66 = vector.broadcast %cst_30 : f32 to vector<4x256xf32>
    %67 = arith.select %65, %54, %66 : vector<4x256xi1>, vector<4x256xf32>
    %c12 = arith.constant 12 : index
    %c0_31 = arith.constant 0 : index
    %68 = vector.load %arg6[%c12, %c0_31] : memref<36x256xf32, #tpu.memory_space<vmem>>, vector<4x256xf32>
    tpu.vector_store %arg6[%c12, %c0_31], %67 {strides = array<i32>} : memref<36x256xf32, #tpu.memory_space<vmem>>, vector<4x256xf32>,
    %c0_32 = arith.constant 0 : index
    %c17_33 = arith.constant 17 : index
    %69 = vector.load %arg5[%c0_32, %c17_33] : memref<4x290xf32, #tpu.memory_space<vmem>>, vector<4x256xf32>
    %c16_34 = arith.constant 16 : index
    %c0_35 = arith.constant 0 : index
    %70 = vector.load %arg6[%c16_34, %c0_35] : memref<36x256xf32, #tpu.memory_space<vmem>>, vector<4x256xf32>
    tpu.vector_store %arg6[%c16_34, %c0_35], %69 {strides = array<i32>} : memref<36x256xf32, #tpu.memory_space<vmem>>, vector<4x256xf32>,
    %c0_36 = arith.constant 0 : index
    %c18 = arith.constant 18 : index
    %71 = vector.load %arg5[%c0_36, %c18] : memref<4x290xf32, #tpu.memory_space<vmem>>, vector<4x256xf32>
    %c1_i32_37 = arith.constant 1 : i32
    %72 = vector.broadcast %c1_i32_37 : i32 to vector<1x256xi32>
    %73 = arith.addi %21, %72 : vector<1x256xi32>
    %c0_i32_38 = arith.constant 0 : i32
    %74 = vector.broadcast %c0_i32_38 : i32 to vector<1x256xi32>
    %75 = arith.cmpi sge, %73, %74 : vector<1x256xi32>
    %c1_i32_39 = arith.constant 1 : i32
    %76 = vector.broadcast %c1_i32_39 : i32 to vector<1x256xi32>
    %77 = arith.addi %21, %76 : vector<1x256xi32>
    %c16_i32_40 = arith.constant 16 : i32
    %78 = vector.broadcast %c16_i32_40 : i32 to vector<1x256xi32>
    %79 = arith.cmpi slt, %77, %78 : vector<1x256xi32>
    %80 = arith.andi %75, %79 : vector<1x256xi1>
    %cst_41 = arith.constant 0.000000e+00 : f32
    %81 = vector.shape_cast %80 : vector<1x256xi1> to vector<1x256xi1>
    %82 = vector.broadcast %81 : vector<1x256xi1> to vector<4x256xi1>
    %83 = vector.broadcast %cst_41 : f32 to vector<4x256xf32>
    %84 = arith.select %82, %71, %83 : vector<4x256xi1>, vector<4x256xf32>
    %c20 = arith.constant 20 : index
    %c0_42 = arith.constant 0 : index
    %85 = vector.load %arg6[%c20, %c0_42] : memref<36x256xf32, #tpu.memory_space<vmem>>, vector<4x256xf32>
    tpu.vector_store %arg6[%c20, %c0_42], %84 {strides = array<i32>} : memref<36x256xf32, #tpu.memory_space<vmem>>, vector<4x256xf32>,
    %c0_43 = arith.constant 0 : index
    %c32 = arith.constant 32 : index
    %86 = vector.load %arg5[%c0_43, %c32] : memref<4x290xf32, #tpu.memory_space<vmem>>, vector<4x256xf32>
    %c-1_i32_44 = arith.constant -1 : i32
    %87 = vector.broadcast %c-1_i32_44 : i32 to vector<1x256xi32>
    %88 = arith.addi %21, %87 : vector<1x256xi32>
    %c0_i32_45 = arith.constant 0 : i32
    %89 = vector.broadcast %c0_i32_45 : i32 to vector<1x256xi32>
    %90 = arith.cmpi sge, %88, %89 : vector<1x256xi32>
    %c-1_i32_46 = arith.constant -1 : i32
    %91 = vector.broadcast %c-1_i32_46 : i32 to vector<1x256xi32>
    %92 = arith.addi %21, %91 : vector<1x256xi32>
    %c16_i32_47 = arith.constant 16 : i32
    %93 = vector.broadcast %c16_i32_47 : i32 to vector<1x256xi32>
    %94 = arith.cmpi slt, %92, %93 : vector<1x256xi32>
    %95 = arith.andi %90, %94 : vector<1x256xi1>
    %cst_48 = arith.constant 0.000000e+00 : f32
    %96 = vector.shape_cast %95 : vector<1x256xi1> to vector<1x256xi1>
    %97 = vector.broadcast %96 : vector<1x256xi1> to vector<4x256xi1>
    %98 = vector.broadcast %cst_48 : f32 to vector<4x256xf32>
    %99 = arith.select %97, %86, %98 : vector<4x256xi1>, vector<4x256xf32>
    %c24 = arith.constant 24 : index
    %c0_49 = arith.constant 0 : index
    %100 = vector.load %arg6[%c24, %c0_49] : memref<36x256xf32, #tpu.memory_space<vmem>>, vector<4x256xf32>
    tpu.vector_store %arg6[%c24, %c0_49], %99 {strides = array<i32>} : memref<36x256xf32, #tpu.memory_space<vmem>>, vector<4x256xf32>,
    %c0_50 = arith.constant 0 : index
    %c33 = arith.constant 33 : index
    %101 = vector.load %arg5[%c0_50, %c33] : memref<4x290xf32, #tpu.memory_space<vmem>>, vector<4x256xf32>
    %c28 = arith.constant 28 : index
    %c0_51 = arith.constant 0 : index
    %102 = vector.load %arg6[%c28, %c0_51] : memref<36x256xf32, #tpu.memory_space<vmem>>, vector<4x256xf32>
    tpu.vector_store %arg6[%c28, %c0_51], %101 {strides = array<i32>} : memref<36x256xf32, #tpu.memory_space<vmem>>, vector<4x256xf32>,
    %c0_52 = arith.constant 0 : index
    %c34 = arith.constant 34 : index
    %103 = vector.load %arg5[%c0_52, %c34] : memref<4x290xf32, #tpu.memory_space<vmem>>, vector<4x256xf32>
    %c1_i32_53 = arith.constant 1 : i32
    %104 = vector.broadcast %c1_i32_53 : i32 to vector<1x256xi32>
    %105 = arith.addi %21, %104 : vector<1x256xi32>
    %c0_i32_54 = arith.constant 0 : i32
    %106 = vector.broadcast %c0_i32_54 : i32 to vector<1x256xi32>
    %107 = arith.cmpi sge, %105, %106 : vector<1x256xi32>
    %c1_i32_55 = arith.constant 1 : i32
    %108 = vector.broadcast %c1_i32_55 : i32 to vector<1x256xi32>
    %109 = arith.addi %21, %108 : vector<1x256xi32>
    %c16_i32_56 = arith.constant 16 : i32
    %110 = vector.broadcast %c16_i32_56 : i32 to vector<1x256xi32>
    %111 = arith.cmpi slt, %109, %110 : vector<1x256xi32>
    %112 = arith.andi %107, %111 : vector<1x256xi1>
    %cst_57 = arith.constant 0.000000e+00 : f32
    %113 = vector.shape_cast %112 : vector<1x256xi1> to vector<1x256xi1>
    %114 = vector.broadcast %113 : vector<1x256xi1> to vector<4x256xi1>
    %115 = vector.broadcast %cst_57 : f32 to vector<4x256xf32>
    %116 = arith.select %114, %103, %115 : vector<4x256xi1>, vector<4x256xf32>
    %c32_58 = arith.constant 32 : index
    %c0_59 = arith.constant 0 : index
    %117 = vector.load %arg6[%c32_58, %c0_59] : memref<36x256xf32, #tpu.memory_space<vmem>>, vector<4x256xf32>
    tpu.vector_store %arg6[%c32_58, %c0_59], %116 {strides = array<i32>} : memref<36x256xf32, #tpu.memory_space<vmem>>, vector<4x256xf32>,
    %c0_60 = arith.constant 0 : index
    %c0_61 = arith.constant 0 : index
    %118 = vector.load %arg2[%c0_60, %c0_61] : memref<8x36xf32, #tpu.memory_space<vmem>>, vector<8x36xf32>
    %c0_62 = arith.constant 0 : index
    %c0_63 = arith.constant 0 : index
    %119 = vector.load %arg6[%c0_62, %c0_63] : memref<36x256xf32, #tpu.memory_space<vmem>>, vector<36x256xf32>
    %cst_64 = arith.constant dense<0.000000e+00> : vector<8x256xf32>
    %120 = tpu.matmul %118, %119, %cst_64 {dimension_numbers = #tpu.dot_dimension_numbers<[1], [0], [0], [1], [0, 0, 1, 1], [], []>} : vector<8x36xf32>, vector<36x256xf32>, vector<8x256xf32> -> vector<8x256xf32>
    %cst_65 = arith.constant dense<0.000000e+00> : vector<8xf32>
    %121 = vector.multi_reduction <add>, %120, %cst_65 [1] : vector<8x256xf32> to vector<8xf32>
    %122 = vector.shape_cast %121 : vector<8xf32> to vector<8x1xf32>
    %123 = arith.mulf %120, %120 : vector<8x256xf32>
    %cst_66 = arith.constant dense<0.000000e+00> : vector<8xf32>
    %124 = vector.multi_reduction <add>, %123, %cst_66 [1] : vector<8x256xf32> to vector<8xf32>
    %125 = vector.shape_cast %124 : vector<8xf32> to vector<8x1xf32>
    %126 = vector.shape_cast %122 : vector<8x1xf32> to vector<1x8x1xf32>
    %c0_67 = arith.constant 0 : index
    %c0_68 = arith.constant 0 : index
    %c0_69 = arith.constant 0 : index
    %127 = vector.load %arg3[%c0_67, %c0_68, %c0_69] : memref<1x8x1xf32, #tpu.memory_space<vmem>>, vector<1x8x1xf32>
    tpu.vector_store %arg3[%c0_67, %c0_68, %c0_69], %126 {strides = array<i32>} : memref<1x8x1xf32, #tpu.memory_space<vmem>>, vector<1x8x1xf32>,
    %128 = vector.shape_cast %125 : vector<8x1xf32> to vector<1x8x1xf32>
    %c0_70 = arith.constant 0 : index
    %c0_71 = arith.constant 0 : index
    %c0_72 = arith.constant 0 : index
    %129 = vector.load %arg4[%c0_70, %c0_71, %c0_72] : memref<1x8x1xf32, #tpu.memory_space<vmem>>, vector<1x8x1xf32>
    tpu.vector_store %arg4[%c0_70, %c0_71, %c0_72], %128 {strides = array<i32>} : memref<1x8x1xf32, #tpu.memory_space<vmem>>, vector<1x8x1xf32>,
    return
  }
  func.func @transform_0(%arg0: i32) -> (i32, i32, i32) {
    %c0_i32 = arith.constant 0 : i32
    %c0_i32_0 = arith.constant 0 : i32
    %c0_i32_1 = arith.constant 0 : i32
    return %arg0, %c0_i32, %c0_i32_0 : i32, i32, i32
  }
  func.func @transform_1(%arg0: i32) -> (i32, i32) {
    %c0_i32 = arith.constant 0 : i32
    %c0_i32_0 = arith.constant 0 : i32
    %c0_i32_1 = arith.constant 0 : i32
    return %c0_i32, %c0_i32_0 : i32, i32
  }
  func.func @transform_2(%arg0: i32) -> (i32, i32, i32) {
    %c0_i32 = arith.constant 0 : i32
    %c0_i32_0 = arith.constant 0 : i32
    %c0_i32_1 = arith.constant 0 : i32
    return %arg0, %c0_i32, %c0_i32_0 : i32, i32, i32
  }
  func.func @transform_3(%arg0: i32) -> (i32, i32, i32) {
    %c0_i32 = arith.constant 0 : i32
    %c0_i32_0 = arith.constant 0 : i32
    %c0_i32_1 = arith.constant 0 : i32
    return %arg0, %c0_i32, %c0_i32_0 : i32, i32, i32
  }
}

module attributes {stable_mosaic.version = 11 : i64} {
  func.func @_conv_bn_relu_kernel(%arg0: i32, %arg1: memref<1x4x256xf32, #tpu.memory_space<vmem>>, %arg2: memref<8x36xf32, #tpu.memory_space<vmem>>, %arg3: memref<8x1xf32, #tpu.memory_space<vmem>>, %arg4: memref<8x1xf32, #tpu.memory_space<vmem>>, %arg5: memref<1x8x256xf32, #tpu.memory_space<vmem>>, %arg6: memref<4x290xf32, #tpu.memory_space<vmem>>, %arg7: memref<36x256xf32, #tpu.memory_space<vmem>>) attributes {dimension_semantics = [#tpu.dimension_semantics<parallel>], iteration_bounds = array<i64: 2>, scalar_prefetch = 0 : i64, scratch_operands = 2 : i64, tpu.core_type = #tpu.core_type<tc>, window_params = [{transform_indices = @transform_0, window_bounds = array<i64: 1, 4, 256>}, {pipeline_mode = #tpu.pipeline_mode<synchronous>, transform_indices = @transform_1, window_bounds = array<i64: 8, 36>}, {pipeline_mode = #tpu.pipeline_mode<synchronous>, transform_indices = @transform_2, window_bounds = array<i64: 8, 1>}, {pipeline_mode = #tpu.pipeline_mode<synchronous>, transform_indices = @transform_3, window_bounds = array<i64: 8, 1>}, {transform_indices = @transform_4, window_bounds = array<i64: 1, 8, 256>}]} {
    %c0 = arith.constant 0 : index
    %c0_0 = arith.constant 0 : index
    %c0_1 = arith.constant 0 : index
    %0 = vector.load %arg1[%c0, %c0_0, %c0_1] : memref<1x4x256xf32, #tpu.memory_space<vmem>>, vector<1x4x256xf32>
    %1 = vector.shape_cast %0 : vector<1x4x256xf32> to vector<4x256xf32>
    %cst = arith.constant 0.000000e+00 : f32
    %2 = vector.broadcast %cst : f32 to vector<4x290xf32>
    %c0_2 = arith.constant 0 : index
    %c0_3 = arith.constant 0 : index
    %3 = vector.load %arg6[%c0_2, %c0_3] : memref<4x290xf32, #tpu.memory_space<vmem>>, vector<4x290xf32>
    tpu.vector_store %arg6[%c0_2, %c0_3], %2 {strides = array<i32>} : memref<4x290xf32, #tpu.memory_space<vmem>>, vector<4x290xf32>,
    %c0_4 = arith.constant 0 : index
    %c17 = arith.constant 17 : index
    %4 = vector.load %arg6[%c0_4, %c17] : memref<4x290xf32, #tpu.memory_space<vmem>>, vector<4x256xf32>
    tpu.vector_store %arg6[%c0_4, %c17], %1 {strides = array<i32>} : memref<4x290xf32, #tpu.memory_space<vmem>>, vector<4x256xf32>,
    %5 = tpu.iota {dimensions = array<i32: 1>} : vector<1x256xi32>
    %c16_i32 = arith.constant 16 : i32
    %c0_i32 = arith.constant 0 : i32
    %6 = arith.cmpi eq, %c16_i32, %c0_i32 : i32
    %c1_i32 = arith.constant 1 : i32
    %7 = arith.select %6, %c1_i32, %c16_i32 : i32
    %8 = vector.broadcast %7 : i32 to vector<1x256xi32>
    %9 = arith.remsi %5, %8 : vector<1x256xi32>
    %c0_i32_5 = arith.constant 0 : i32
    %10 = vector.broadcast %c0_i32_5 : i32 to vector<1x256xi32>
    %11 = arith.cmpi ne, %9, %10 : vector<1x256xi32>
    %c0_i32_6 = arith.constant 0 : i32
    %12 = vector.broadcast %c0_i32_6 : i32 to vector<1x256xi32>
    %13 = arith.cmpi slt, %9, %12 : vector<1x256xi32>
    %c0_i32_7 = arith.constant 0 : i32
    %14 = arith.cmpi slt, %7, %c0_i32_7 : i32
    %15 = vector.broadcast %14 : i1 to vector<1x256xi1>
    %16 = vector.broadcast %15 : vector<1x256xi1> to vector<1x256xi1>
    %17 = arith.xori %13, %16 : vector<1x256xi1>
    %18 = arith.andi %17, %11 : vector<1x256xi1>
    %19 = vector.broadcast %7 : i32 to vector<1x256xi32>
    %20 = arith.addi %9, %19 : vector<1x256xi32>
    %21 = arith.select %18, %20, %9 : vector<1x256xi1>, vector<1x256xi32>
    %c0_8 = arith.constant 0 : index
    %c0_9 = arith.constant 0 : index
    %22 = vector.load %arg6[%c0_8, %c0_9] : memref<4x290xf32, #tpu.memory_space<vmem>>, vector<4x256xf32>
    %c-1_i32 = arith.constant -1 : i32
    %23 = vector.broadcast %c-1_i32 : i32 to vector<1x256xi32>
    %24 = arith.addi %21, %23 : vector<1x256xi32>
    %c0_i32_10 = arith.constant 0 : i32
    %25 = vector.broadcast %c0_i32_10 : i32 to vector<1x256xi32>
    %26 = arith.cmpi sge, %24, %25 : vector<1x256xi32>
    %c-1_i32_11 = arith.constant -1 : i32
    %27 = vector.broadcast %c-1_i32_11 : i32 to vector<1x256xi32>
    %28 = arith.addi %21, %27 : vector<1x256xi32>
    %c16_i32_12 = arith.constant 16 : i32
    %29 = vector.broadcast %c16_i32_12 : i32 to vector<1x256xi32>
    %30 = arith.cmpi slt, %28, %29 : vector<1x256xi32>
    %31 = arith.andi %26, %30 : vector<1x256xi1>
    %cst_13 = arith.constant 0.000000e+00 : f32
    %32 = vector.shape_cast %31 : vector<1x256xi1> to vector<1x256xi1>
    %33 = vector.broadcast %32 : vector<1x256xi1> to vector<4x256xi1>
    %34 = vector.broadcast %cst_13 : f32 to vector<4x256xf32>
    %35 = arith.select %33, %22, %34 : vector<4x256xi1>, vector<4x256xf32>
    %c0_14 = arith.constant 0 : index
    %c0_15 = arith.constant 0 : index
    %36 = vector.load %arg7[%c0_14, %c0_15] : memref<36x256xf32, #tpu.memory_space<vmem>>, vector<4x256xf32>
    tpu.vector_store %arg7[%c0_14, %c0_15], %35 {strides = array<i32>} : memref<36x256xf32, #tpu.memory_space<vmem>>, vector<4x256xf32>,
    %c0_16 = arith.constant 0 : index
    %c1 = arith.constant 1 : index
    %37 = vector.load %arg6[%c0_16, %c1] : memref<4x290xf32, #tpu.memory_space<vmem>>, vector<4x256xf32>
    %c4 = arith.constant 4 : index
    %c0_17 = arith.constant 0 : index
    %38 = vector.load %arg7[%c4, %c0_17] : memref<36x256xf32, #tpu.memory_space<vmem>>, vector<4x256xf32>
    tpu.vector_store %arg7[%c4, %c0_17], %37 {strides = array<i32>} : memref<36x256xf32, #tpu.memory_space<vmem>>, vector<4x256xf32>,
    %c0_18 = arith.constant 0 : index
    %c2 = arith.constant 2 : index
    %39 = vector.load %arg6[%c0_18, %c2] : memref<4x290xf32, #tpu.memory_space<vmem>>, vector<4x256xf32>
    %c1_i32_19 = arith.constant 1 : i32
    %40 = vector.broadcast %c1_i32_19 : i32 to vector<1x256xi32>
    %41 = arith.addi %21, %40 : vector<1x256xi32>
    %c0_i32_20 = arith.constant 0 : i32
    %42 = vector.broadcast %c0_i32_20 : i32 to vector<1x256xi32>
    %43 = arith.cmpi sge, %41, %42 : vector<1x256xi32>
    %c1_i32_21 = arith.constant 1 : i32
    %44 = vector.broadcast %c1_i32_21 : i32 to vector<1x256xi32>
    %45 = arith.addi %21, %44 : vector<1x256xi32>
    %c16_i32_22 = arith.constant 16 : i32
    %46 = vector.broadcast %c16_i32_22 : i32 to vector<1x256xi32>
    %47 = arith.cmpi slt, %45, %46 : vector<1x256xi32>
    %48 = arith.andi %43, %47 : vector<1x256xi1>
    %cst_23 = arith.constant 0.000000e+00 : f32
    %49 = vector.shape_cast %48 : vector<1x256xi1> to vector<1x256xi1>
    %50 = vector.broadcast %49 : vector<1x256xi1> to vector<4x256xi1>
    %51 = vector.broadcast %cst_23 : f32 to vector<4x256xf32>
    %52 = arith.select %50, %39, %51 : vector<4x256xi1>, vector<4x256xf32>
    %c8 = arith.constant 8 : index
    %c0_24 = arith.constant 0 : index
    %53 = vector.load %arg7[%c8, %c0_24] : memref<36x256xf32, #tpu.memory_space<vmem>>, vector<4x256xf32>
    tpu.vector_store %arg7[%c8, %c0_24], %52 {strides = array<i32>} : memref<36x256xf32, #tpu.memory_space<vmem>>, vector<4x256xf32>,
    %c0_25 = arith.constant 0 : index
    %c16 = arith.constant 16 : index
    %54 = vector.load %arg6[%c0_25, %c16] : memref<4x290xf32, #tpu.memory_space<vmem>>, vector<4x256xf32>
    %c-1_i32_26 = arith.constant -1 : i32
    %55 = vector.broadcast %c-1_i32_26 : i32 to vector<1x256xi32>
    %56 = arith.addi %21, %55 : vector<1x256xi32>
    %c0_i32_27 = arith.constant 0 : i32
    %57 = vector.broadcast %c0_i32_27 : i32 to vector<1x256xi32>
    %58 = arith.cmpi sge, %56, %57 : vector<1x256xi32>
    %c-1_i32_28 = arith.constant -1 : i32
    %59 = vector.broadcast %c-1_i32_28 : i32 to vector<1x256xi32>
    %60 = arith.addi %21, %59 : vector<1x256xi32>
    %c16_i32_29 = arith.constant 16 : i32
    %61 = vector.broadcast %c16_i32_29 : i32 to vector<1x256xi32>
    %62 = arith.cmpi slt, %60, %61 : vector<1x256xi32>
    %63 = arith.andi %58, %62 : vector<1x256xi1>
    %cst_30 = arith.constant 0.000000e+00 : f32
    %64 = vector.shape_cast %63 : vector<1x256xi1> to vector<1x256xi1>
    %65 = vector.broadcast %64 : vector<1x256xi1> to vector<4x256xi1>
    %66 = vector.broadcast %cst_30 : f32 to vector<4x256xf32>
    %67 = arith.select %65, %54, %66 : vector<4x256xi1>, vector<4x256xf32>
    %c12 = arith.constant 12 : index
    %c0_31 = arith.constant 0 : index
    %68 = vector.load %arg7[%c12, %c0_31] : memref<36x256xf32, #tpu.memory_space<vmem>>, vector<4x256xf32>
    tpu.vector_store %arg7[%c12, %c0_31], %67 {strides = array<i32>} : memref<36x256xf32, #tpu.memory_space<vmem>>, vector<4x256xf32>,
    %c0_32 = arith.constant 0 : index
    %c17_33 = arith.constant 17 : index
    %69 = vector.load %arg6[%c0_32, %c17_33] : memref<4x290xf32, #tpu.memory_space<vmem>>, vector<4x256xf32>
    %c16_34 = arith.constant 16 : index
    %c0_35 = arith.constant 0 : index
    %70 = vector.load %arg7[%c16_34, %c0_35] : memref<36x256xf32, #tpu.memory_space<vmem>>, vector<4x256xf32>
    tpu.vector_store %arg7[%c16_34, %c0_35], %69 {strides = array<i32>} : memref<36x256xf32, #tpu.memory_space<vmem>>, vector<4x256xf32>,
    %c0_36 = arith.constant 0 : index
    %c18 = arith.constant 18 : index
    %71 = vector.load %arg6[%c0_36, %c18] : memref<4x290xf32, #tpu.memory_space<vmem>>, vector<4x256xf32>
    %c1_i32_37 = arith.constant 1 : i32
    %72 = vector.broadcast %c1_i32_37 : i32 to vector<1x256xi32>
    %73 = arith.addi %21, %72 : vector<1x256xi32>
    %c0_i32_38 = arith.constant 0 : i32
    %74 = vector.broadcast %c0_i32_38 : i32 to vector<1x256xi32>
    %75 = arith.cmpi sge, %73, %74 : vector<1x256xi32>
    %c1_i32_39 = arith.constant 1 : i32
    %76 = vector.broadcast %c1_i32_39 : i32 to vector<1x256xi32>
    %77 = arith.addi %21, %76 : vector<1x256xi32>
    %c16_i32_40 = arith.constant 16 : i32
    %78 = vector.broadcast %c16_i32_40 : i32 to vector<1x256xi32>
    %79 = arith.cmpi slt, %77, %78 : vector<1x256xi32>
    %80 = arith.andi %75, %79 : vector<1x256xi1>
    %cst_41 = arith.constant 0.000000e+00 : f32
    %81 = vector.shape_cast %80 : vector<1x256xi1> to vector<1x256xi1>
    %82 = vector.broadcast %81 : vector<1x256xi1> to vector<4x256xi1>
    %83 = vector.broadcast %cst_41 : f32 to vector<4x256xf32>
    %84 = arith.select %82, %71, %83 : vector<4x256xi1>, vector<4x256xf32>
    %c20 = arith.constant 20 : index
    %c0_42 = arith.constant 0 : index
    %85 = vector.load %arg7[%c20, %c0_42] : memref<36x256xf32, #tpu.memory_space<vmem>>, vector<4x256xf32>
    tpu.vector_store %arg7[%c20, %c0_42], %84 {strides = array<i32>} : memref<36x256xf32, #tpu.memory_space<vmem>>, vector<4x256xf32>,
    %c0_43 = arith.constant 0 : index
    %c32 = arith.constant 32 : index
    %86 = vector.load %arg6[%c0_43, %c32] : memref<4x290xf32, #tpu.memory_space<vmem>>, vector<4x256xf32>
    %c-1_i32_44 = arith.constant -1 : i32
    %87 = vector.broadcast %c-1_i32_44 : i32 to vector<1x256xi32>
    %88 = arith.addi %21, %87 : vector<1x256xi32>
    %c0_i32_45 = arith.constant 0 : i32
    %89 = vector.broadcast %c0_i32_45 : i32 to vector<1x256xi32>
    %90 = arith.cmpi sge, %88, %89 : vector<1x256xi32>
    %c-1_i32_46 = arith.constant -1 : i32
    %91 = vector.broadcast %c-1_i32_46 : i32 to vector<1x256xi32>
    %92 = arith.addi %21, %91 : vector<1x256xi32>
    %c16_i32_47 = arith.constant 16 : i32
    %93 = vector.broadcast %c16_i32_47 : i32 to vector<1x256xi32>
    %94 = arith.cmpi slt, %92, %93 : vector<1x256xi32>
    %95 = arith.andi %90, %94 : vector<1x256xi1>
    %cst_48 = arith.constant 0.000000e+00 : f32
    %96 = vector.shape_cast %95 : vector<1x256xi1> to vector<1x256xi1>
    %97 = vector.broadcast %96 : vector<1x256xi1> to vector<4x256xi1>
    %98 = vector.broadcast %cst_48 : f32 to vector<4x256xf32>
    %99 = arith.select %97, %86, %98 : vector<4x256xi1>, vector<4x256xf32>
    %c24 = arith.constant 24 : index
    %c0_49 = arith.constant 0 : index
    %100 = vector.load %arg7[%c24, %c0_49] : memref<36x256xf32, #tpu.memory_space<vmem>>, vector<4x256xf32>
    tpu.vector_store %arg7[%c24, %c0_49], %99 {strides = array<i32>} : memref<36x256xf32, #tpu.memory_space<vmem>>, vector<4x256xf32>,
    %c0_50 = arith.constant 0 : index
    %c33 = arith.constant 33 : index
    %101 = vector.load %arg6[%c0_50, %c33] : memref<4x290xf32, #tpu.memory_space<vmem>>, vector<4x256xf32>
    %c28 = arith.constant 28 : index
    %c0_51 = arith.constant 0 : index
    %102 = vector.load %arg7[%c28, %c0_51] : memref<36x256xf32, #tpu.memory_space<vmem>>, vector<4x256xf32>
    tpu.vector_store %arg7[%c28, %c0_51], %101 {strides = array<i32>} : memref<36x256xf32, #tpu.memory_space<vmem>>, vector<4x256xf32>,
    %c0_52 = arith.constant 0 : index
    %c34 = arith.constant 34 : index
    %103 = vector.load %arg6[%c0_52, %c34] : memref<4x290xf32, #tpu.memory_space<vmem>>, vector<4x256xf32>
    %c1_i32_53 = arith.constant 1 : i32
    %104 = vector.broadcast %c1_i32_53 : i32 to vector<1x256xi32>
    %105 = arith.addi %21, %104 : vector<1x256xi32>
    %c0_i32_54 = arith.constant 0 : i32
    %106 = vector.broadcast %c0_i32_54 : i32 to vector<1x256xi32>
    %107 = arith.cmpi sge, %105, %106 : vector<1x256xi32>
    %c1_i32_55 = arith.constant 1 : i32
    %108 = vector.broadcast %c1_i32_55 : i32 to vector<1x256xi32>
    %109 = arith.addi %21, %108 : vector<1x256xi32>
    %c16_i32_56 = arith.constant 16 : i32
    %110 = vector.broadcast %c16_i32_56 : i32 to vector<1x256xi32>
    %111 = arith.cmpi slt, %109, %110 : vector<1x256xi32>
    %112 = arith.andi %107, %111 : vector<1x256xi1>
    %cst_57 = arith.constant 0.000000e+00 : f32
    %113 = vector.shape_cast %112 : vector<1x256xi1> to vector<1x256xi1>
    %114 = vector.broadcast %113 : vector<1x256xi1> to vector<4x256xi1>
    %115 = vector.broadcast %cst_57 : f32 to vector<4x256xf32>
    %116 = arith.select %114, %103, %115 : vector<4x256xi1>, vector<4x256xf32>
    %c32_58 = arith.constant 32 : index
    %c0_59 = arith.constant 0 : index
    %117 = vector.load %arg7[%c32_58, %c0_59] : memref<36x256xf32, #tpu.memory_space<vmem>>, vector<4x256xf32>
    tpu.vector_store %arg7[%c32_58, %c0_59], %116 {strides = array<i32>} : memref<36x256xf32, #tpu.memory_space<vmem>>, vector<4x256xf32>,
    %c0_60 = arith.constant 0 : index
    %c0_61 = arith.constant 0 : index
    %118 = vector.load %arg2[%c0_60, %c0_61] : memref<8x36xf32, #tpu.memory_space<vmem>>, vector<8x36xf32>
    %c0_62 = arith.constant 0 : index
    %c0_63 = arith.constant 0 : index
    %119 = vector.load %arg7[%c0_62, %c0_63] : memref<36x256xf32, #tpu.memory_space<vmem>>, vector<36x256xf32>
    %cst_64 = arith.constant dense<0.000000e+00> : vector<8x256xf32>
    %120 = tpu.matmul %118, %119, %cst_64 {dimension_numbers = #tpu.dot_dimension_numbers<[1], [0], [0], [1], [0, 0, 1, 1], [], []>} : vector<8x36xf32>, vector<36x256xf32>, vector<8x256xf32> -> vector<8x256xf32>
    %c0_65 = arith.constant 0 : index
    %c0_66 = arith.constant 0 : index
    %121 = vector.load %arg3[%c0_65, %c0_66] : memref<8x1xf32, #tpu.memory_space<vmem>>, vector<8x1xf32>
    %122 = vector.broadcast %121 : vector<8x1xf32> to vector<8x256xf32>
    %123 = arith.mulf %120, %122 : vector<8x256xf32>
    %c0_67 = arith.constant 0 : index
    %c0_68 = arith.constant 0 : index
    %124 = vector.load %arg4[%c0_67, %c0_68] : memref<8x1xf32, #tpu.memory_space<vmem>>, vector<8x1xf32>
    %125 = vector.broadcast %124 : vector<8x1xf32> to vector<8x256xf32>
    %126 = arith.addf %123, %125 : vector<8x256xf32>
    %cst_69 = arith.constant 0.000000e+00 : f32
    %127 = vector.broadcast %cst_69 : f32 to vector<8x256xf32>
    %128 = arith.maximumf %126, %127 : vector<8x256xf32>
    %129 = vector.shape_cast %128 : vector<8x256xf32> to vector<1x8x256xf32>
    %c0_70 = arith.constant 0 : index
    %c0_71 = arith.constant 0 : index
    %c0_72 = arith.constant 0 : index
    %130 = vector.load %arg5[%c0_70, %c0_71, %c0_72] : memref<1x8x256xf32, #tpu.memory_space<vmem>>, vector<1x8x256xf32>
    tpu.vector_store %arg5[%c0_70, %c0_71, %c0_72], %129 {strides = array<i32>} : memref<1x8x256xf32, #tpu.memory_space<vmem>>, vector<1x8x256xf32>,
    return
  }
  func.func @transform_0(%arg0: i32) -> (i32, i32, i32) {
    %c0_i32 = arith.constant 0 : i32
    %c0_i32_0 = arith.constant 0 : i32
    %c0_i32_1 = arith.constant 0 : i32
    return %arg0, %c0_i32, %c0_i32_0 : i32, i32, i32
  }
  func.func @transform_1(%arg0: i32) -> (i32, i32) {
    %c0_i32 = arith.constant 0 : i32
    %c0_i32_0 = arith.constant 0 : i32
    %c0_i32_1 = arith.constant 0 : i32
    return %c0_i32, %c0_i32_0 : i32, i32
  }
  func.func @transform_2(%arg0: i32) -> (i32, i32) {
    %c0_i32 = arith.constant 0 : i32
    %c0_i32_0 = arith.constant 0 : i32
    %c0_i32_1 = arith.constant 0 : i32
    return %c0_i32, %c0_i32_0 : i32, i32
  }
  func.func @transform_3(%arg0: i32) -> (i32, i32) {
    %c0_i32 = arith.constant 0 : i32
    %c0_i32_0 = arith.constant 0 : i32
    %c0_i32_1 = arith.constant 0 : i32
    return %c0_i32, %c0_i32_0 : i32, i32
  }
  func.func @transform_4(%arg0: i32) -> (i32, i32, i32) {
    %c0_i32 = arith.constant 0 : i32
    %c0_i32_0 = arith.constant 0 : i32
    %c0_i32_1 = arith.constant 0 : i32
    return %arg0, %c0_i32, %c0_i32_0 : i32, i32, i32
  }
}

</mosaic_0001>

<llo_original>
// kernel: conv_bnr.2
$region0: #{conv_bnr.2}
  #allocation0 [shape = 'u32[]', space=smem, size = 0x4, offset = 0x4, fixed_abs, tag = 'smem constant byte address 0x4 - core index']
  #allocation1 [shape = 'u32[144,128]{1,0:T(1,128)}', space=vmem, size = 0x12000, scoped, tag = 'internal scratch']
  #allocation2 [shape = 'f32[4,290]{1,0:T(4,128)}', space=vmem, size = 0x1800, scoped, tag = 'scratch operand']
  #allocation3 [shape = 'f32[36,256]{1,0:T(8,128)}', space=vmem, size = 0xa000, scoped, tag = 'scratch operand']
  %s0 = inlined_call_operand.vmem [shape: f32[2,4,256], index: 0, kind: input, shape index: {}]
  %s1 = inlined_call_operand.vmem [shape: f32[8,36], index: 1, kind: input, shape index: {}]
  %s2 = inlined_call_operand.vmem [shape: f32[2,8,1], index: 2, kind: output, shape index: {0}]
  %s3 = inlined_call_operand.vmem [shape: f32[2,8,1], index: 3, kind: output, shape index: {1}]
  %4 = xla_tuple %s2, %s3
  %s5 = sld [smem:[#allocation0]]
  $region49: #{conv_bnr.2} parent=0
    _
  %s7 = ssub.s32 1, %s5
  %s8 = scalar_select 0, %s7, %s5
  loop: start=0, step=1, limit=4
  $region2: #{conv_bnr.2} parent=0 // loop_pre_header
    _
  $region3: #{conv_bnr.2} parent=0 // loop_header
    %s10 = sphi 0, %s14
    %p11 = scmp.ge.s32.totalorder %s10, 4
    %s20 = sphi 0, %s22
    %s23 = sphi 0, %s20
    %s24 = sphi 0, %s23
    %s40 = sphi 0, %s24
    %s44 = sphi 0, %s44
    %s46 = sphi 0, %s44
    %s47 = sphi 0, %s46
    %s61 = sphi 0, %s47
    %s67 = sphi 0, %s69
    %s70 = sphi 0, %s67
    %s71 = sphi 0, %s70
    %s87 = sphi 0, %s71
    %s93 = sphi 0, %s95
    %s96 = sphi 0, %s93
    %s97 = sphi 0, %s96
    %s113 = sphi 0, %s97
  $region4: #{conv_bnr.2} parent=0 // loop_header_branch
    %13 = sbr.rel (%p11) target = $region8
  $region5: #{conv_bnr.2} parent=0 // loop_body
    %s15 = ssub.s32 %s10, 1
    %s16 = ssub.s32 %s10, 2
    %s17 = sadd.s32 %s10, 1
    %s18 = ssub.s32 %s10, %s17
    %p19 = scmp.eq.s32.totalorder %s18, 0
    %s21 = sadd.s32 %s20, 1
    %s22 = scalar_select %p19, %s20, %s21
    %p25 = pneg %p19
    %p26 = scmp.eq.s32.totalorder %s10, 1
    %p27 = por %p25, %p26
    %p28 = scmp.ne.s32.totalorder %s20, %s23
    %p29 = scmp.eq.s32.totalorder %s10, 0
    %p30 = por %p28, %p29
    %p31 = scmp.ne.s32.totalorder %s20, %s23
    %p32 = scmp.eq.s32.totalorder %s15, 1
    %p33 = por %p31, %p32
    %p34 = scmp.ne.s32.totalorder %s23, %s24
    %p35 = scmp.eq.s32.totalorder %s15, 0
    %p36 = por %p34, %p35
    %p37 = scmp.ne.s32.totalorder %s23, %s24
    %p38 = scmp.eq.s32.totalorder %s16, 1
    %p39 = por %p37, %p38
    %p41 = scmp.ne.s32.totalorder %s24, %s40
    %p42 = scmp.eq.s32.totalorder %s16, 0
    %p43 = por %p41, %p42
    %s45 = sadd.s32 %s44, 1
    %p48 = scmp.eq.s32.totalorder %s10, 1
    %p49 = scmp.ne.s32.totalorder %s44, %s46
    %p50 = scmp.eq.s32.totalorder %s10, 0
    %p51 = por %p49, %p50
    %p52 = scmp.ne.s32.totalorder %s44, %s46
    %p53 = scmp.eq.s32.totalorder %s15, 1
    %p54 = por %p52, %p53
    %p55 = scmp.ne.s32.totalorder %s46, %s47
    %p56 = scmp.eq.s32.totalorder %s15, 0
    %p57 = por %p55, %p56
    %p58 = scmp.ne.s32.totalorder %s46, %s47
    %p59 = scmp.eq.s32.totalorder %s16, 1
    %p60 = por %p58, %p59
    %p62 = scmp.ne.s32.totalorder %s47, %s61
    %p63 = scmp.eq.s32.totalorder %s16, 0
    %p64 = por %p62, %p63
    %s65 = ssub.s32 %s10, %s17
    %p66 = scmp.eq.s32.totalorder %s65, 0
    %s68 = sadd.s32 %s67, 1
    %s69 = scalar_select %p66, %s67, %s68
    %p72 = pneg %p66
    %p73 = scmp.eq.s32.totalorder %s10, 1
    %p74 = por %p72, %p73
    %p75 = scmp.ne.s32.totalorder %s67, %s70
    %p76 = scmp.eq.s32.totalorder %s10, 0
    %p77 = por %p75, %p76
    %p78 = scmp.ne.s32.totalorder %s67, %s70
    %p79 = scmp.eq.s32.totalorder %s15, 1
    %p80 = por %p78, %p79
    %p81 = scmp.ne.s32.totalorder %s70, %s71
    %p82 = scmp.eq.s32.totalorder %s15, 0
    %p83 = por %p81, %p82
    %p84 = scmp.ne.s32.totalorder %s70, %s71
    %p85 = scmp.eq.s32.totalorder %s16, 1
    %p86 = por %p84, %p85
    %p88 = scmp.ne.s32.totalorder %s71, %s87
    %p89 = scmp.eq.s32.totalorder %s16, 0
    %p90 = por %p88, %p89
    %s91 = ssub.s32 %s10, %s17
    %p92 = scmp.eq.s32.totalorder %s91, 0
    %s94 = sadd.s32 %s93, 1
    %s95 = scalar_select %p92, %s93, %s94
    %p98 = pneg %p92
    %p99 = scmp.eq.s32.totalorder %s10, 1
    %p100 = por %p98, %p99
    %p101 = scmp.ne.s32.totalorder %s93, %s96
    %p102 = scmp.eq.s32.totalorder %s10, 0
    %p103 = por %p101, %p102
    %p104 = scmp.ne.s32.totalorder %s93, %s96
    %p105 = scmp.eq.s32.totalorder %s15, 1
    %p106 = por %p104, %p105
    %p107 = scmp.ne.s32.totalorder %s96, %s97
    %p108 = scmp.eq.s32.totalorder %s15, 0
    %p109 = por %p107, %p108
    %p110 = scmp.ne.s32.totalorder %s96, %s97
    %p111 = scmp.eq.s32.totalorder %s16, 1
    %p112 = por %p110, %p111
    %p114 = scmp.ne.s32.totalorder %s97, %s113
    %p115 = scmp.eq.s32.totalorder %s16, 0
    %p116 = por %p114, %p115
    %p117 = scmp.le.s32.totalorder 1, %s10
    %p118 = scmp.lt.s32.totalorder %s10, 3
    %p119 = pnand %p117, %p118
    %p120 = pneg %p119
    // Predicated region
    $region9: #{conv_bnr.2} parent=5 // pred_check
      _
    $region10: #{conv_bnr.2} parent=5 // pred_check_branch
      %122 = sbr.rel (%p119) target = $region12
    $region11: #{conv_bnr.2} parent=5 // pred_region
      %s123 = ssub.s32 %s10, 1
      // Predicated region
      $region13: #{conv_bnr.2} parent=11 // pred_check
        %p124 = pneg %p57
      $region14: #{conv_bnr.2} parent=11 // pred_check_branch
        %126 = sbr.rel (%p124) target = $region16
      $region15: #{conv_bnr.2} parent=11 // pred_region
        _
      $region16: #{conv_bnr.2} parent=11 // pred_fallthru
        _
    $region12: #{conv_bnr.2} parent=5 // pred_fallthru
      _
    %p127 = scmp.lt.s32.totalorder %s10, 2
    // Predicated region
    $region17: #{conv_bnr.2} parent=5 // pred_check
      %p128 = pneg %p127
    $region18: #{conv_bnr.2} parent=5 // pred_check_branch
      %130 = sbr.rel (%p128) target = $region20
    $region19: #{conv_bnr.2} parent=5 // pred_region
      // Predicated region
      $region21: #{conv_bnr.2} parent=19 // pred_check
        %p131 = pneg %p30
      $region22: #{conv_bnr.2} parent=19 // pred_check_branch
        %133 = sbr.rel (%p131) target = $region24
      $region23: #{conv_bnr.2} parent=19 // pred_region
        %p134 = scmp.lt.s32.totalorder %s10, 1
        %s135 = scalar_select %p134, %s10, 1
        %s136 = smul.addr %s135, 2
        %s137 = smul.addr %s136, 4
        %s138 = scalar_lea.vmem %s0, %s137
      $region24: #{conv_bnr.2} parent=19 // pred_fallthru
        _
    $region20: #{conv_bnr.2} parent=5 // pred_fallthru
      _
    %p139 = scmp.le.s32.totalorder 1, %s10
    %p140 = scmp.lt.s32.totalorder %s10, 3
    %p141 = pnand %p139, %p140
    %p142 = pneg %p141
    // Predicated region
    $region25: #{conv_bnr.2} parent=5 // pred_check
      _
    $region26: #{conv_bnr.2} parent=5 // pred_check_branch
      %144 = sbr.rel (%p141) target = $region28
    $region27: #{conv_bnr.2} parent=5 // pred_region
      %s145 = ssub.s32 %s10, 1
      %p146 = scmp.lt.s32.totalorder %s15, 1
      %s147 = scalar_select %p146, %s15, 1
      %s148 = smul.addr %s147, 2
      %s149 = smul.addr %s148, 4
      %s150 = scalar_lea.vmem %s0, %s149
      %p151 = pneg %p36
      %p152 = pneg %p33
      %p153 = pneg %p57
      %p154 = pneg %p54
      %p155 = pneg %p83
      %p156 = pneg %p80
      %p157 = scmp.lt.s32.totalorder %s15, 1
      %s158 = scalar_select %p157, %s15, 1
      %s159 = smul.addr %s158, 8
      %s160 = scalar_lea.vmem %s2, %s159
      %p161 = pneg %p109
      %p162 = pneg %p106
      %p163 = scmp.lt.s32.totalorder %s15, 1
      %s164 = scalar_select %p163, %s15, 1
      %s165 = smul.addr %s164, 8
      %s166 = scalar_lea.vmem %s3, %s165
      %p167 = scmp.lt.s32.totalorder %s15, 1
      %s168 = scalar_select %p167, %s15, 1
      %s169 = smul.addr %s168, 2
      %s170 = smul.addr %s169, 4
      %s171 = scalar_lea.vmem %s0, %s170
      %p172 = scmp.lt.s32.totalorder %s15, 1
      %s173 = scalar_select %p172, %s15, 1
      %s174 = smul.addr %s173, 8
      %s175 = scalar_lea.vmem %s2, %s174
      %p176 = scmp.lt.s32.totalorder %s15, 1
      %s177 = scalar_select %p176, %s15, 1
      %s178 = smul.addr %s177, 8
      %s179 = scalar_lea.vmem %s3, %s178
      %v180 = vld [vmem:[%s171] sm:$0xff]
      %181 = vst [vmem:[#allocation2] sm:$0xff] 0.0
      %vm182 = vcmask 273408
      %183 = vst.msk [vmem:[#allocation2 + $0x8] sm:$0xf] %vm182, 0.0
      %185 = vrot.lane.b32.xlu0 %v180, 17
      %v186 = vpop.permute.xlu0 %185
      %v187 = vrot.slane %v186, 4
      %vm188 = vcmask 138240
      %v189 = vsel %vm188, %v187, %v186
      %vm192 = vcmask 1043592
      %vm193 = vcmask 1047556
      %vm194 = vmor %vm193, %vm192
      %195 = vst.msk [vmem:[#allocation2] sm:$0xff] %vm194, %v189
      %vm196 = vcmask 134144
      %197 = vst.msk [vmem:[#allocation2 + $0x8] sm:$0xf] %vm196, %v187
      %v198 = vlaneseq
      %v199 = vand.u32 %v198, 127
      %v200 = vadd.s32 %v199, 128
      %vm201 = vcmp.lt.s32.totalorder %v199, 0
      %v202 = vsub.s32 0, %v199
      %v203 = vsel %vm201, %v202, %v199
      %v204 = vshrl.u32 %v203, 4
      %v205 = vand.u32 %v203, 15
      %v206 = vsub.s32 0, %v205
      %v207 = vsel %vm201, %v206, %v205
      %vm208 = vcmp.lt.s32.totalorder %v200, 0
      %v209 = vsub.s32 0, %v200
      %v210 = vsel %vm208, %v209, %v200
      %v211 = vshrl.u32 %v210, 4
      %v212 = vand.u32 %v210, 15
      %v213 = vsub.s32 0, %v212
      %v214 = vsel %vm208, %v213, %v212
      %vm215 = vcmp.ne.s32.totalorder %v207, 0
      %vm216 = vcmp.ne.s32.totalorder %v214, 0
      %vm217 = vcmp.lt.s32.totalorder %v207, 0
      %vm218 = vcmp.lt.s32.totalorder %v214, 0
      %vm219 = vmand %vm217, %vm215
      %vm220 = vmand %vm218, %vm216
      %v221 = vadd.s32 %v207, 16
      %v222 = vadd.s32 %v214, 16
      %v223 = vsel %vm219, %v221, %v207
      %v224 = vsel %vm220, %v222, %v214
      %v225 = vld [vmem:[#allocation2] sm:$0xff]
      %v226 = vadd.s32 %v223, 4294967295
      %v227 = vadd.s32 %v224, 4294967295
      %vm228 = vcmp.ge.s32.totalorder %v226, 0
      %vm229 = vcmp.ge.s32.totalorder %v227, 0
      %vm230 = vcmp.lt.s32.totalorder %v226, 16
      %vm231 = vcmp.lt.s32.totalorder %v227, 16
      %vm232 = vmand %vm228, %vm230
      %vm233 = vmand %vm229, %vm231
      %v234 = vsel %vm232, 1, 0
      %v235 = vsel %vm233, 1, 0
      %vm236 = vcmp.eq.s32.totalorder %v234, 1
      %vm237 = vcmp.eq.s32.totalorder %v235, 1
      %v239 = vcombine.high %v225, %v225
      %v241 = vsel %vm236, %v225, 0.0
      %v242 = vsel %vm237, %v239, 0.0
      %243 = vst [vmem:[#allocation3] sm:$0xf] %v241
      %244 = vst [vmem:[#allocation3 + $0x8] sm:$0xf] %v242
      %v245 = vld [vmem:[#allocation2] sm:$0xff]
      %v246 = vld [vmem:[#allocation2 + $0x8] sm:$0xf]
      %v249 = vcombine.low %v245, %v245
      %v250 = vcombine.low %v246, %v246
      %251 = vrot.lane.b32.xlu0 %v249, 127
      %v252 = vpop.permute.xlu0 %251
      %253 = vrot.lane.b32.xlu0 %v245, 127
      %v254 = vpop.permute.xlu0 %253
      %255 = vrot.lane.b32.xlu0 %v250, 127
      %v256 = vpop.permute.xlu0 %255
      %vm257 = vcmask 1039360
      %v258 = vsel %vm257, %v252, %v254
      %v259 = vsel %vm257, %v254, %v256
      %262 = vst [vmem:[#allocation3] sm:$0xf0] %v258
      %263 = vst [vmem:[#allocation3 + $0x8] sm:$0xf0] %v259
      %v264 = vld [vmem:[#allocation2] sm:$0xff]
      %v265 = vld [vmem:[#allocation2 + $0x8] sm:$0xf]
      %v266 = vadd.s32 %v223, 1
      %v267 = vadd.s32 %v224, 1
      %vm268 = vcmp.ge.s32.totalorder %v266, 0
      %vm269 = vcmp.ge.s32.totalorder %v267, 0
      %vm270 = vcmp.lt.s32.totalorder %v266, 16
      %vm271 = vcmp.lt.s32.totalorder %v267, 16
      %vm272 = vmand %vm268, %vm270
      %vm273 = vmand %vm269, %vm271
      %v274 = vsel %vm272, 1, 0
      %v275 = vsel %vm273, 1, 0
      %vm276 = vcmp.eq.s32.totalorder %v274, 1
      %vm277 = vcmp.eq.s32.totalorder %v275, 1
      %v280 = vcombine.high %v264, %v264
      %281 = vrot.lane.b32.xlu0 %v264, 126
      %v282 = vpop.permute.xlu0 %281
      %283 = vrot.lane.b32.xlu0 %v280, 126
      %v284 = vpop.permute.xlu0 %283
      %285 = vrot.lane.b32.xlu0 %v265, 126
      %v286 = vpop.permute.xlu0 %285
      %vm287 = vcmask 1031168
      %v288 = vsel %vm287, %v282, %v284
      %v289 = vsel %vm287, %v284, %v286
      %v292 = vsel %vm276, %v288, 0.0
      %v293 = vsel %vm277, %v289, 0.0
      %294 = vst [vmem:[#allocation3 + $0x10] sm:$0xf] %v292
      %295 = vst [vmem:[#allocation3 + $0x18] sm:$0xf] %v293
      %v296 = vld [vmem:[#allocation2] sm:$0xff]
      %v297 = vld [vmem:[#allocation2 + $0x8] sm:$0xf]
      %v300 = vcombine.high %v296, %v296
      %301 = vrot.lane.b32.xlu0 %v296, 112
      %v302 = vpop.permute.xlu0 %301
      %303 = vrot.lane.b32.xlu0 %v300, 112
      %v304 = vpop.permute.xlu0 %303
      %305 = vrot.lane.b32.xlu0 %v297, 112
      %v306 = vpop.permute.xlu0 %305
      %vm307 = vcmask 916480
      %v308 = vsel %vm307, %v302, %v304
      %v309 = vsel %vm307, %v304, %v306
      %v312 = vsel %vm236, %v308, 0.0
      %v313 = vsel %vm237, %v309, 0.0
      %v316 = vrot.slane %v312, 4
      %v317 = vrot.slane %v313, 4
      %320 = vst [vmem:[#allocation3 + $0x10] sm:$0xf0] %v316
      %321 = vst [vmem:[#allocation3 + $0x18] sm:$0xf0] %v317
      %v322 = vld [vmem:[#allocation2] sm:$0xff]
      %v323 = vld [vmem:[#allocation2 + $0x8] sm:$0xf]
      %v326 = vcombine.high %v322, %v322
      %327 = vrot.lane.b32.xlu0 %v322, 111
      %v328 = vpop.permute.xlu0 %327
      %329 = vrot.lane.b32.xlu0 %v326, 111
      %v330 = vpop.permute.xlu0 %329
      %331 = vrot.lane.b32.xlu0 %v323, 111
      %v332 = vpop.permute.xlu0 %331
      %vm333 = vcmask 908288
      %v334 = vsel %vm333, %v328, %v330
      %v335 = vsel %vm333, %v330, %v332
      %338 = vst [vmem:[#allocation3 + $0x20] sm:$0xf] %v334
      %339 = vst [vmem:[#allocation3 + $0x28] sm:$0xf] %v335
      %v340 = vld [vmem:[#allocation2] sm:$0xff]
      %v341 = vld [vmem:[#allocation2 + $0x8] sm:$0xf]
      %v344 = vcombine.high %v340, %v340
      %345 = vrot.lane.b32.xlu0 %v340, 110
      %v346 = vpop.permute.xlu0 %345
      %347 = vrot.lane.b32.xlu0 %v344, 110
      %v348 = vpop.permute.xlu0 %347
      %349 = vrot.lane.b32.xlu0 %v341, 110
      %v350 = vpop.permute.xlu0 %349
      %vm351 = vcmask 900096
      %v352 = vsel %vm351, %v346, %v348
      %v353 = vsel %vm351, %v348, %v350
      %v356 = vsel %vm276, %v352, 0.0
      %v357 = vsel %vm277, %v353, 0.0
      %v360 = vrot.slane %v356, 4
      %v361 = vrot.slane %v357, 4
      %364 = vst [vmem:[#allocation3 + $0x20] sm:$0xf0] %v360
      %365 = vst [vmem:[#allocation3 + $0x28] sm:$0xf0] %v361
      %v366 = vld [vmem:[#allocation2] sm:$0xff]
      %v367 = vld [vmem:[#allocation2 + $0x8] sm:$0xf]
      %v370 = vcombine.high %v366, %v366
      %371 = vrot.lane.b32.xlu0 %v366, 96
      %v372 = vpop.permute.xlu0 %371
      %373 = vrot.lane.b32.xlu0 %v370, 96
      %v374 = vpop.permute.xlu0 %373
      %375 = vrot.lane.b32.xlu0 %v367, 96
      %v376 = vpop.permute.xlu0 %375
      %vm377 = vcmask 785408
      %v378 = vsel %vm377, %v372, %v374
      %v379 = vsel %vm377, %v374, %v376
      %v382 = vsel %vm236, %v378, 0.0
      %v383 = vsel %vm237, %v379, 0.0
      %384 = vst [vmem:[#allocation3 + $0x30] sm:$0xf] %v382
      %385 = vst [vmem:[#allocation3 + $0x38] sm:$0xf] %v383
      %v386 = vld [vmem:[#allocation2] sm:$0xff]
      %v387 = vld [vmem:[#allocation2 + $0x8] sm:$0xf]
      %v390 = vcombine.low %v386, %v386
      %v391 = vcombine.low %v387, %v387
      %392 = vrot.lane.b32.xlu0 %v390, 95
      %v393 = vpop.permute.xlu0 %392
      %394 = vrot.lane.b32.xlu0 %v386, 95
      %v395 = vpop.permute.xlu0 %394
      %396 = vrot.lane.b32.xlu0 %v391, 95
      %v397 = vpop.permute.xlu0 %396
      %vm398 = vcmask 777216
      %v399 = vsel %vm398, %v393, %v395
      %v400 = vsel %vm398, %v395, %v397
      %403 = vst [vmem:[#allocation3 + $0x30] sm:$0xf0] %v399
      %404 = vst [vmem:[#allocation3 + $0x38] sm:$0xf0] %v400
      %v405 = vld [vmem:[#allocation2] sm:$0xff]
      %v406 = vld [vmem:[#allocation2 + $0x8] sm:$0xf]
      %v409 = vcombine.high %v405, %v405
      %410 = vrot.lane.b32.xlu0 %v405, 94
      %v411 = vpop.permute.xlu0 %410
      %412 = vrot.lane.b32.xlu0 %v409, 94
      %v413 = vpop.permute.xlu0 %412
      %414 = vrot.lane.b32.xlu0 %v406, 94
      %v415 = vpop.permute.xlu0 %414
      %vm416 = vcmask 769024
      %v417 = vsel %vm416, %v411, %v413
      %v418 = vsel %vm416, %v413, %v415
      %v421 = vsel %vm276, %v417, 0.0
      %v422 = vsel %vm277, %v418, 0.0
      %423 = vst [vmem:[#allocation3 + $0x40] sm:$0xf] %v421
      %424 = vst [vmem:[#allocation3 + $0x48] sm:$0xf] %v422
      %v425 = vld [vmem:[%s1] sm:$0xff]
      %v426 = vld [vmem:[#allocation3] sm:$0xff]
      %v427 = vld [vmem:[#allocation3 + $0x8] sm:$0xff]
      %v428 = vld [vmem:[#allocation3 + $0x10] sm:$0xff]
      %v429 = vld [vmem:[#allocation3 + $0x18] sm:$0xff]
      %v430 = vld [vmem:[#allocation3 + $0x20] sm:$0xff]
      %v431 = vld [vmem:[#allocation3 + $0x28] sm:$0xff]
      %v432 = vld [vmem:[#allocation3 + $0x30] sm:$0xff]
      %v433 = vld [vmem:[#allocation3 + $0x38] sm:$0xff]
      %v434 = vld [vmem:[#allocation3 + $0x40] sm:$0xf]
      %v435 = vld [vmem:[#allocation3 + $0x48] sm:$0xf]
      %vm436 = vcmask 293888
      %v438 = vsel %vm436, %v425, 0
      %vm440 = vcmask 1043456
      %v442 = vsel %vm440, %v434, 0
      %v445 = vsel %vm440, %v435, 0
      %447 = vmatprep.subr.mxu0 %v427
      %448 = vmatpush1.msra.mxu0 %v426
      %449 = vmatprep.subr.mxu0 %v429
      %450 = vmatpush1.msra.mxu0 %v428
      %451 = vmatprep.subr.mxu0 %v431
      %452 = vmatpush1.msra.mxu0 %v430
      %453 = vmatprep.subr.mxu0 %v433
      %454 = vmatpush1.msra.mxu0 %v432
      %455 = vmatprep.subr.mxu0 %v445
      %456 = vmatpush1.msra.mxu0 %v442
      %457 = vmatprep.subr.mxu0 0.0
      %458 = vmatpush1.msra.mxu0 0.0
      %459 = vmatprep.subr.mxu0 0.0
      %460 = vmatpush1.msra.mxu0 0.0
      %461 = vmatprep.subr.mxu0 0.0
      %462 = vmatpush1.msra.mxu0 0.0
      %463 = vmatprep.subr.mxu0 0.0
      %464 = vmatpush1.msra.mxu0 0.0
      %465 = vmatprep.subr.mxu0 0.0
      %466 = vmatpush1.msra.mxu0 0.0
      %467 = vmatprep.subr.mxu0 0.0
      %468 = vmatpush1.msra.mxu0 0.0
      %469 = vmatprep.subr.mxu0 0.0
      %470 = vmatpush1.msra.mxu0 0.0
      %471 = vmatprep.subr.mxu0 0.0
      %472 = vmatpush1.msra.mxu0 0.0
      %473 = vmatprep.subr.mxu0 0.0
      %474 = vmatpush1.msra.mxu0 0.0
      %475 = vmatprep.subr.mxu0 0.0
      %476 = vmatpush1.msra.mxu0 0.0
      %477 = vmatprep.subr.mxu0 0.0
      %478 = vmatpush1.msra.mxu0 0.0
      %479 = vmatprep.subr.mxu0 0.0
      %480 = vmatpush1.msra.mxu0 0.0
      %481 = vmatprep.subr.mxu0 0.0
      %482 = vmatpush1.msra.mxu0 0.0
      %483 = vmatprep.subr.mxu0 0.0
      %484 = vmatpush1.msra.mxu0 0.0
      %485 = vmatprep.subr.mxu0 0.0
      %486 = vmatpush1.msra.mxu0 0.0
      %487 = vmatprep.subr.mxu0 0.0
      %488 = vmatpush1.msra.mxu0 0.0
      %489 = vmatprep.subr.mxu0 0.0
      %490 = vmatpush1.msra.mxu0 0.0
      %491 = vmatprep.subr.mxu0 0.0
      %492 = vmatpush1.msra.mxu0 0.0
      %493 = vmatprep.subr.mxu0 0.0
      %494 = vmatpush1.msra.mxu0 0.0
      %495 = vmatprep.subr.mxu0 0.0
      %496 = vmatpush1.msra.mxu0 0.0
      %497 = vmatprep.subr.mxu0 0.0
      %498 = vmatpush1.msra.mxu0 0.0
      %499 = vmatprep.subr.mxu0 0.0
      %500 = vmatpush1.msra.mxu0 0.0
      %501 = vmatprep.subr.mxu0 0.0
      %502 = vmatpush1.msra.mxu0 0.0
      %503 = vmatprep.subr.mxu0 0.0
      %504 = vmatpush1.msra.mxu0 0.0
      %505 = vmatprep.subr.mxu0 0.0
      %506 = vmatpush1.msra.mxu0 0.0
      %507 = vmatprep.subr.mxu0 0.0
      %508 = vmatpush1.msra.mxu0 0.0
      %509 = vmatprep.subr.mxu0 0.0
      %510 = vmatpush1.msra.mxu0 0.0
      %511 = vmatprep.mubr.f32.mxu0 0.0
      %512 = vmatmul.mubr.f32.gmra.mrb[0].mxu0 %v438
      %v513 = vpop.f32.mrb[0].mxu0
      %v514 = vadd.f32 0.0, %v513
      %v515 = vpop.f32.mrb[0].mxu0
      %v516 = vadd.f32 0.0, %v515
      %517 = vdwg.mxu0
      %v518 = vadd.f32 %v514, %v516
      %519 = vadd.xlane.f32.xlu0 %v518
      %v520 = vpop.xlane.xlu0 %519
      %v521 = vmul.f32 %v514, %v514
      %v522 = vmul.f32 %v516, %v516
      %v523 = vadd.f32 %v521, %v522
      %524 = vadd.xlane.f32.xlu0 %v523
      %v525 = vpop.xlane.xlu0 %524
      %vm526 = vcmask 7168
      %527 = vst.msk [vmem:[%s175] sm:$0xff] %vm526, %v520
      %528 = vst.msk [vmem:[%s179] sm:$0xff] %vm526, %v525
      %p529 = scmp.lt.s32.totalorder %s15, 1
      %s530 = scalar_select %p529, %s15, 1
      %s531 = smul.addr %s530, 8
      %s532 = scalar_lea.vmem %s2, %s531
      %p533 = scmp.lt.s32.totalorder %s15, 1
      %s534 = scalar_select %p533, %s15, 1
      %s535 = smul.addr %s534, 8
      %s536 = scalar_lea.vmem %s3, %s535
      // Predicated region
      $region29: #{conv_bnr.2} parent=27 // pred_check
        %p537 = pneg %p80
      $region30: #{conv_bnr.2} parent=27 // pred_check_branch
        %539 = sbr.rel (%p537) target = $region32
      $region31: #{conv_bnr.2} parent=27 // pred_region
        _
      $region32: #{conv_bnr.2} parent=27 // pred_fallthru
        _
      // Predicated region
      $region33: #{conv_bnr.2} parent=27 // pred_check
        %p540 = pneg %p106
      $region34: #{conv_bnr.2} parent=27 // pred_check_branch
        %542 = sbr.rel (%p540) target = $region36
      $region35: #{conv_bnr.2} parent=27 // pred_region
        _
      $region36: #{conv_bnr.2} parent=27 // pred_fallthru
        _
    $region28: #{conv_bnr.2} parent=5 // pred_fallthru
      _
    %p543 = scmp.le.s32.totalorder 2, %s10
    // Predicated region
    $region37: #{conv_bnr.2} parent=5 // pred_check
      %p544 = pneg %p543
    $region38: #{conv_bnr.2} parent=5 // pred_check_branch
      %546 = sbr.rel (%p544) target = $region40
    $region39: #{conv_bnr.2} parent=5 // pred_region
      %s547 = ssub.s32 %s10, 2
      // Predicated region
      $region41: #{conv_bnr.2} parent=39 // pred_check
        %p548 = pneg %p86
      $region42: #{conv_bnr.2} parent=39 // pred_check_branch
        %550 = sbr.rel (%p548) target = $region44
      $region43: #{conv_bnr.2} parent=39 // pred_region
        %p551 = scmp.lt.s32.totalorder %s16, 1
        %s552 = scalar_select %p551, %s16, 1
        %s553 = smul.addr %s552, 8
        %s554 = scalar_lea.vmem %s2, %s553
      $region44: #{conv_bnr.2} parent=39 // pred_fallthru
        _
      // Predicated region
      $region45: #{conv_bnr.2} parent=39 // pred_check
        %p555 = pneg %p112
      $region46: #{conv_bnr.2} parent=39 // pred_check_branch
        %557 = sbr.rel (%p555) target = $region48
      $region47: #{conv_bnr.2} parent=39 // pred_region
        %p558 = scmp.lt.s32.totalorder %s16, 1
        %s559 = scalar_select %p558, %s16, 1
        %s560 = smul.addr %s559, 8
        %s561 = scalar_lea.vmem %s3, %s560
      $region48: #{conv_bnr.2} parent=39 // pred_fallthru
        _
    $region40: #{conv_bnr.2} parent=5 // pred_fallthru
      _
  $region6: #{conv_bnr.2} parent=0 // loop_footer
    %s14 = sadd.s32 1, %s10
  $region7: #{conv_bnr.2} parent=0 // loop_footer_branch
    %9 = sbr.rel target = $region3
  $region8: #{conv_bnr.2} parent=0 // loop_exit
    _

// kernel: conv_bnr.3
$region0: #{conv_bnr.3}
  #allocation0 [shape = 'u32[]', space=smem, size = 0x4, offset = 0x4, fixed_abs, tag = 'smem constant byte address 0x4 - core index']
  #allocation1 [shape = 'u32[144,128]{1,0:T(1,128)}', space=vmem, size = 0x12000, scoped, tag = 'internal scratch']
  #allocation2 [shape = 'f32[4,290]{1,0:T(4,128)}', space=vmem, size = 0x1800, scoped, tag = 'scratch operand']
  #allocation3 [shape = 'f32[36,256]{1,0:T(8,128)}', space=vmem, size = 0xa000, scoped, tag = 'scratch operand']
  %s0 = inlined_call_operand.vmem [shape: f32[2,4,256], index: 0, kind: input, shape index: {}]
  %s1 = inlined_call_operand.vmem [shape: f32[8,36], index: 1, kind: input, shape index: {}]
  %s2 = inlined_call_operand.vmem [shape: f32[8,1], index: 2, kind: input, shape index: {}]
  %s3 = inlined_call_operand.vmem [shape: f32[8,1], index: 3, kind: input, shape index: {}]
  %s4 = inlined_call_operand.vmem [shape: f32[2,8,256], index: 4, kind: output, shape index: {}]
  %s5 = sld [smem:[#allocation0]]
  $region49: #{conv_bnr.3} parent=0
    _
  %s7 = ssub.s32 1, %s5
  %s8 = scalar_select 0, %s7, %s5
  loop: start=0, step=1, limit=4
  $region2: #{conv_bnr.3} parent=0 // loop_pre_header
    _
  $region3: #{conv_bnr.3} parent=0 // loop_header
    %s10 = sphi 0, %s14
    %p11 = scmp.ge.s32.totalorder %s10, 4
    %s20 = sphi 0, %s22
    %s23 = sphi 0, %s20
    %s24 = sphi 0, %s23
    %s40 = sphi 0, %s24
    %s44 = sphi 0, %s44
    %s46 = sphi 0, %s44
    %s47 = sphi 0, %s46
    %s61 = sphi 0, %s47
    %s65 = sphi 0, %s65
    %s67 = sphi 0, %s65
    %s68 = sphi 0, %s67
    %s82 = sphi 0, %s68
    %s86 = sphi 0, %s86
    %s88 = sphi 0, %s86
    %s89 = sphi 0, %s88
    %s103 = sphi 0, %s89
    %s109 = sphi 0, %s111
    %s112 = sphi 0, %s109
    %s113 = sphi 0, %s112
    %s129 = sphi 0, %s113
  $region4: #{conv_bnr.3} parent=0 // loop_header_branch
    %13 = sbr.rel (%p11) target = $region8
  $region5: #{conv_bnr.3} parent=0 // loop_body
    %s15 = ssub.s32 %s10, 1
    %s16 = ssub.s32 %s10, 2
    %s17 = sadd.s32 %s10, 1
    %s18 = ssub.s32 %s10, %s17
    %p19 = scmp.eq.s32.totalorder %s18, 0
    %s21 = sadd.s32 %s20, 1
    %s22 = scalar_select %p19, %s20, %s21
    %p25 = pneg %p19
    %p26 = scmp.eq.s32.totalorder %s10, 1
    %p27 = por %p25, %p26
    %p28 = scmp.ne.s32.totalorder %s20, %s23
    %p29 = scmp.eq.s32.totalorder %s10, 0
    %p30 = por %p28, %p29
    %p31 = scmp.ne.s32.totalorder %s20, %s23
    %p32 = scmp.eq.s32.totalorder %s15, 1
    %p33 = por %p31, %p32
    %p34 = scmp.ne.s32.totalorder %s23, %s24
    %p35 = scmp.eq.s32.totalorder %s15, 0
    %p36 = por %p34, %p35
    %p37 = scmp.ne.s32.totalorder %s23, %s24
    %p38 = scmp.eq.s32.totalorder %s16, 1
    %p39 = por %p37, %p38
    %p41 = scmp.ne.s32.totalorder %s24, %s40
    %p42 = scmp.eq.s32.totalorder %s16, 0
    %p43 = por %p41, %p42
    %s45 = sadd.s32 %s44, 1
    %p48 = scmp.eq.s32.totalorder %s10, 1
    %p49 = scmp.ne.s32.totalorder %s44, %s46
    %p50 = scmp.eq.s32.totalorder %s10, 0
    %p51 = por %p49, %p50
    %p52 = scmp.ne.s32.totalorder %s44, %s46
    %p53 = scmp.eq.s32.totalorder %s15, 1
    %p54 = por %p52, %p53
    %p55 = scmp.ne.s32.totalorder %s46, %s47
    %p56 = scmp.eq.s32.totalorder %s15, 0
    %p57 = por %p55, %p56
    %p58 = scmp.ne.s32.totalorder %s46, %s47
    %p59 = scmp.eq.s32.totalorder %s16, 1
    %p60 = por %p58, %p59
    %p62 = scmp.ne.s32.totalorder %s47, %s61
    %p63 = scmp.eq.s32.totalorder %s16, 0
    %p64 = por %p62, %p63
    %s66 = sadd.s32 %s65, 1
    %p69 = scmp.eq.s32.totalorder %s10, 1
    %p70 = scmp.ne.s32.totalorder %s65, %s67
    %p71 = scmp.eq.s32.totalorder %s10, 0
    %p72 = por %p70, %p71
    %p73 = scmp.ne.s32.totalorder %s65, %s67
    %p74 = scmp.eq.s32.totalorder %s15, 1
    %p75 = por %p73, %p74
    %p76 = scmp.ne.s32.totalorder %s67, %s68
    %p77 = scmp.eq.s32.totalorder %s15, 0
    %p78 = por %p76, %p77
    %p79 = scmp.ne.s32.totalorder %s67, %s68
    %p80 = scmp.eq.s32.totalorder %s16, 1
    %p81 = por %p79, %p80
    %p83 = scmp.ne.s32.totalorder %s68, %s82
    %p84 = scmp.eq.s32.totalorder %s16, 0
    %p85 = por %p83, %p84
    %s87 = sadd.s32 %s86, 1
    %p90 = scmp.eq.s32.totalorder %s10, 1
    %p91 = scmp.ne.s32.totalorder %s86, %s88
    %p92 = scmp.eq.s32.totalorder %s10, 0
    %p93 = por %p91, %p92
    %p94 = scmp.ne.s32.totalorder %s86, %s88
    %p95 = scmp.eq.s32.totalorder %s15, 1
    %p96 = por %p94, %p95
    %p97 = scmp.ne.s32.totalorder %s88, %s89
    %p98 = scmp.eq.s32.totalorder %s15, 0
    %p99 = por %p97, %p98
    %p100 = scmp.ne.s32.totalorder %s88, %s89
    %p101 = scmp.eq.s32.totalorder %s16, 1
    %p102 = por %p100, %p101
    %p104 = scmp.ne.s32.totalorder %s89, %s103
    %p105 = scmp.eq.s32.totalorder %s16, 0
    %p106 = por %p104, %p105
    %s107 = ssub.s32 %s10, %s17
    %p108 = scmp.eq.s32.totalorder %s107, 0
    %s110 = sadd.s32 %s109, 1
    %s111 = scalar_select %p108, %s109, %s110
    %p114 = pneg %p108
    %p115 = scmp.eq.s32.totalorder %s10, 1
    %p116 = por %p114, %p115
    %p117 = scmp.ne.s32.totalorder %s109, %s112
    %p118 = scmp.eq.s32.totalorder %s10, 0
    %p119 = por %p117, %p118
    %p120 = scmp.ne.s32.totalorder %s109, %s112
    %p121 = scmp.eq.s32.totalorder %s15, 1
    %p122 = por %p120, %p121
    %p123 = scmp.ne.s32.totalorder %s112, %s113
    %p124 = scmp.eq.s32.totalorder %s15, 0
    %p125 = por %p123, %p124
    %p126 = scmp.ne.s32.totalorder %s112, %s113
    %p127 = scmp.eq.s32.totalorder %s16, 1
    %p128 = por %p126, %p127
    %p130 = scmp.ne.s32.totalorder %s113, %s129
    %p131 = scmp.eq.s32.totalorder %s16, 0
    %p132 = por %p130, %p131
    %p133 = scmp.le.s32.totalorder 1, %s10
    %p134 = scmp.lt.s32.totalorder %s10, 3
    %p135 = pnand %p133, %p134
    %p136 = pneg %p135
    // Predicated region
    $region9: #{conv_bnr.3} parent=5 // pred_check
      _
    $region10: #{conv_bnr.3} parent=5 // pred_check_branch
      %138 = sbr.rel (%p135) target = $region12
    $region11: #{conv_bnr.3} parent=5 // pred_region
      %s139 = ssub.s32 %s10, 1
      // Predicated region
      $region13: #{conv_bnr.3} parent=11 // pred_check
        %p140 = pneg %p57
      $region14: #{conv_bnr.3} parent=11 // pred_check_branch
        %142 = sbr.rel (%p140) target = $region16
      $region15: #{conv_bnr.3} parent=11 // pred_region
        _
      $region16: #{conv_bnr.3} parent=11 // pred_fallthru
        _
      // Predicated region
      $region17: #{conv_bnr.3} parent=11 // pred_check
        %p143 = pneg %p78
      $region18: #{conv_bnr.3} parent=11 // pred_check_branch
        %145 = sbr.rel (%p143) target = $region20
      $region19: #{conv_bnr.3} parent=11 // pred_region
        _
      $region20: #{conv_bnr.3} parent=11 // pred_fallthru
        _
      // Predicated region
      $region21: #{conv_bnr.3} parent=11 // pred_check
        %p146 = pneg %p99
      $region22: #{conv_bnr.3} parent=11 // pred_check_branch
        %148 = sbr.rel (%p146) target = $region24
      $region23: #{conv_bnr.3} parent=11 // pred_region
        _
      $region24: #{conv_bnr.3} parent=11 // pred_fallthru
        _
    $region12: #{conv_bnr.3} parent=5 // pred_fallthru
      _
    %p149 = scmp.lt.s32.totalorder %s10, 2
    // Predicated region
    $region25: #{conv_bnr.3} parent=5 // pred_check
      %p150 = pneg %p149
    $region26: #{conv_bnr.3} parent=5 // pred_check_branch
      %152 = sbr.rel (%p150) target = $region28
    $region27: #{conv_bnr.3} parent=5 // pred_region
      // Predicated region
      $region29: #{conv_bnr.3} parent=27 // pred_check
        %p153 = pneg %p30
      $region30: #{conv_bnr.3} parent=27 // pred_check_branch
        %155 = sbr.rel (%p153) target = $region32
      $region31: #{conv_bnr.3} parent=27 // pred_region
        %p156 = scmp.lt.s32.totalorder %s10, 1
        %s157 = scalar_select %p156, %s10, 1
        %s158 = smul.addr %s157, 2
        %s159 = smul.addr %s158, 4
        %s160 = scalar_lea.vmem %s0, %s159
      $region32: #{conv_bnr.3} parent=27 // pred_fallthru
        _
    $region28: #{conv_bnr.3} parent=5 // pred_fallthru
      _
    %p161 = scmp.le.s32.totalorder 1, %s10
    %p162 = scmp.lt.s32.totalorder %s10, 3
    %p163 = pnand %p161, %p162
    %p164 = pneg %p163
    // Predicated region
    $region33: #{conv_bnr.3} parent=5 // pred_check
      _
    $region34: #{conv_bnr.3} parent=5 // pred_check_branch
      %166 = sbr.rel (%p163) target = $region36
    $region35: #{conv_bnr.3} parent=5 // pred_region
      %s167 = ssub.s32 %s10, 1
      %p168 = scmp.lt.s32.totalorder %s15, 1
      %s169 = scalar_select %p168, %s15, 1
      %s170 = smul.addr %s169, 2
      %s171 = smul.addr %s170, 4
      %s172 = scalar_lea.vmem %s0, %s171
      %p173 = pneg %p36
      %p174 = pneg %p33
      %p175 = pneg %p57
      %p176 = pneg %p54
      %p177 = pneg %p78
      %p178 = pneg %p75
      %p179 = pneg %p99
      %p180 = pneg %p96
      %p181 = pneg %p125
      %p182 = pneg %p122
      %p183 = scmp.lt.s32.totalorder %s15, 1
      %s184 = scalar_select %p183, %s15, 1
      %s185 = smul.addr %s184, 2
      %s186 = smul.addr %s185, 8
      %s187 = scalar_lea.vmem %s4, %s186
      %p188 = scmp.lt.s32.totalorder %s15, 1
      %s189 = scalar_select %p188, %s15, 1
      %s190 = smul.addr %s189, 2
      %s191 = smul.addr %s190, 4
      %s192 = scalar_lea.vmem %s0, %s191
      %p193 = scmp.lt.s32.totalorder %s15, 1
      %s194 = scalar_select %p193, %s15, 1
      %s195 = smul.addr %s194, 2
      %s196 = smul.addr %s195, 8
      %s197 = scalar_lea.vmem %s4, %s196
      %v198 = vld [vmem:[%s192] sm:$0xff]
      %199 = vst [vmem:[#allocation2] sm:$0xff] 0.0
      %vm200 = vcmask 273408
      %201 = vst.msk [vmem:[#allocation2 + $0x8] sm:$0xf] %vm200, 0.0
      %203 = vrot.lane.b32.xlu0 %v198, 17
      %v204 = vpop.permute.xlu0 %203
      %v205 = vrot.slane %v204, 4
      %vm206 = vcmask 138240
      %v207 = vsel %vm206, %v205, %v204
      %vm210 = vcmask 1043592
      %vm211 = vcmask 1047556
      %vm212 = vmor %vm211, %vm210
      %213 = vst.msk [vmem:[#allocation2] sm:$0xff] %vm212, %v207
      %vm214 = vcmask 134144
      %215 = vst.msk [vmem:[#allocation2 + $0x8] sm:$0xf] %vm214, %v205
      %v216 = vlaneseq
      %v217 = vand.u32 %v216, 127
      %v218 = vadd.s32 %v217, 128
      %vm219 = vcmp.lt.s32.totalorder %v217, 0
      %v220 = vsub.s32 0, %v217
      %v221 = vsel %vm219, %v220, %v217
      %v222 = vshrl.u32 %v221, 4
      %v223 = vand.u32 %v221, 15
      %v224 = vsub.s32 0, %v223
      %v225 = vsel %vm219, %v224, %v223
      %vm226 = vcmp.lt.s32.totalorder %v218, 0
      %v227 = vsub.s32 0, %v218
      %v228 = vsel %vm226, %v227, %v218
      %v229 = vshrl.u32 %v228, 4
      %v230 = vand.u32 %v228, 15
      %v231 = vsub.s32 0, %v230
      %v232 = vsel %vm226, %v231, %v230
      %vm233 = vcmp.ne.s32.totalorder %v225, 0
      %vm234 = vcmp.ne.s32.totalorder %v232, 0
      %vm235 = vcmp.lt.s32.totalorder %v225, 0
      %vm236 = vcmp.lt.s32.totalorder %v232, 0
      %vm237 = vmand %vm235, %vm233
      %vm238 = vmand %vm236, %vm234
      %v239 = vadd.s32 %v225, 16
      %v240 = vadd.s32 %v232, 16
      %v241 = vsel %vm237, %v239, %v225
      %v242 = vsel %vm238, %v240, %v232
      %v243 = vld [vmem:[#allocation2] sm:$0xff]
      %v244 = vadd.s32 %v241, 4294967295
      %v245 = vadd.s32 %v242, 4294967295
      %vm246 = vcmp.ge.s32.totalorder %v244, 0
      %vm247 = vcmp.ge.s32.totalorder %v245, 0
      %vm248 = vcmp.lt.s32.totalorder %v244, 16
      %vm249 = vcmp.lt.s32.totalorder %v245, 16
      %vm250 = vmand %vm246, %vm248
      %vm251 = vmand %vm247, %vm249
      %v252 = vsel %vm250, 1, 0
      %v253 = vsel %vm251, 1, 0
      %vm254 = vcmp.eq.s32.totalorder %v252, 1
      %vm255 = vcmp.eq.s32.totalorder %v253, 1
      %v257 = vcombine.high %v243, %v243
      %v259 = vsel %vm254, %v243, 0.0
      %v260 = vsel %vm255, %v257, 0.0
      %261 = vst [vmem:[#allocation3] sm:$0xf] %v259
      %262 = vst [vmem:[#allocation3 + $0x8] sm:$0xf] %v260
      %v263 = vld [vmem:[#allocation2] sm:$0xff]
      %v264 = vld [vmem:[#allocation2 + $0x8] sm:$0xf]
      %v267 = vcombine.low %v263, %v263
      %v268 = vcombine.low %v264, %v264
      %269 = vrot.lane.b32.xlu0 %v267, 127
      %v270 = vpop.permute.xlu0 %269
      %271 = vrot.lane.b32.xlu0 %v263, 127
      %v272 = vpop.permute.xlu0 %271
      %273 = vrot.lane.b32.xlu0 %v268, 127
      %v274 = vpop.permute.xlu0 %273
      %vm275 = vcmask 1039360
      %v276 = vsel %vm275, %v270, %v272
      %v277 = vsel %vm275, %v272, %v274
      %280 = vst [vmem:[#allocation3] sm:$0xf0] %v276
      %281 = vst [vmem:[#allocation3 + $0x8] sm:$0xf0] %v277
      %v282 = vld [vmem:[#allocation2] sm:$0xff]
      %v283 = vld [vmem:[#allocation2 + $0x8] sm:$0xf]
      %v284 = vadd.s32 %v241, 1
      %v285 = vadd.s32 %v242, 1
      %vm286 = vcmp.ge.s32.totalorder %v284, 0
      %vm287 = vcmp.ge.s32.totalorder %v285, 0
      %vm288 = vcmp.lt.s32.totalorder %v284, 16
      %vm289 = vcmp.lt.s32.totalorder %v285, 16
      %vm290 = vmand %vm286, %vm288
      %vm291 = vmand %vm287, %vm289
      %v292 = vsel %vm290, 1, 0
      %v293 = vsel %vm291, 1, 0
      %vm294 = vcmp.eq.s32.totalorder %v292, 1
      %vm295 = vcmp.eq.s32.totalorder %v293, 1
      %v298 = vcombine.high %v282, %v282
      %299 = vrot.lane.b32.xlu0 %v282, 126
      %v300 = vpop.permute.xlu0 %299
      %301 = vrot.lane.b32.xlu0 %v298, 126
      %v302 = vpop.permute.xlu0 %301
      %303 = vrot.lane.b32.xlu0 %v283, 126
      %v304 = vpop.permute.xlu0 %303
      %vm305 = vcmask 1031168
      %v306 = vsel %vm305, %v300, %v302
      %v307 = vsel %vm305, %v302, %v304
      %v310 = vsel %vm294, %v306, 0.0
      %v311 = vsel %vm295, %v307, 0.0
      %312 = vst [vmem:[#allocation3 + $0x10] sm:$0xf] %v310
      %313 = vst [vmem:[#allocation3 + $0x18] sm:$0xf] %v311
      %v314 = vld [vmem:[#allocation2] sm:$0xff]
      %v315 = vld [vmem:[#allocation2 + $0x8] sm:$0xf]
      %v318 = vcombine.high %v314, %v314
      %319 = vrot.lane.b32.xlu0 %v314, 112
      %v320 = vpop.permute.xlu0 %319
      %321 = vrot.lane.b32.xlu0 %v318, 112
      %v322 = vpop.permute.xlu0 %321
      %323 = vrot.lane.b32.xlu0 %v315, 112
      %v324 = vpop.permute.xlu0 %323
      %vm325 = vcmask 916480
      %v326 = vsel %vm325, %v320, %v322
      %v327 = vsel %vm325, %v322, %v324
      %v330 = vsel %vm254, %v326, 0.0
      %v331 = vsel %vm255, %v327, 0.0
      %v334 = vrot.slane %v330, 4
      %v335 = vrot.slane %v331, 4
      %338 = vst [vmem:[#allocation3 + $0x10] sm:$0xf0] %v334
      %339 = vst [vmem:[#allocation3 + $0x18] sm:$0xf0] %v335
      %v340 = vld [vmem:[#allocation2] sm:$0xff]
      %v341 = vld [vmem:[#allocation2 + $0x8] sm:$0xf]
      %v344 = vcombine.high %v340, %v340
      %345 = vrot.lane.b32.xlu0 %v340, 111
      %v346 = vpop.permute.xlu0 %345
      %347 = vrot.lane.b32.xlu0 %v344, 111
      %v348 = vpop.permute.xlu0 %347
      %349 = vrot.lane.b32.xlu0 %v341, 111
      %v350 = vpop.permute.xlu0 %349
      %vm351 = vcmask 908288
      %v352 = vsel %vm351, %v346, %v348
      %v353 = vsel %vm351, %v348, %v350
      %356 = vst [vmem:[#allocation3 + $0x20] sm:$0xf] %v352
      %357 = vst [vmem:[#allocation3 + $0x28] sm:$0xf] %v353
      %v358 = vld [vmem:[#allocation2] sm:$0xff]
      %v359 = vld [vmem:[#allocation2 + $0x8] sm:$0xf]
      %v362 = vcombine.high %v358, %v358
      %363 = vrot.lane.b32.xlu0 %v358, 110
      %v364 = vpop.permute.xlu0 %363
      %365 = vrot.lane.b32.xlu0 %v362, 110
      %v366 = vpop.permute.xlu0 %365
      %367 = vrot.lane.b32.xlu0 %v359, 110
      %v368 = vpop.permute.xlu0 %367
      %vm369 = vcmask 900096
      %v370 = vsel %vm369, %v364, %v366
      %v371 = vsel %vm369, %v366, %v368
      %v374 = vsel %vm294, %v370, 0.0
      %v375 = vsel %vm295, %v371, 0.0
      %v378 = vrot.slane %v374, 4
      %v379 = vrot.slane %v375, 4
      %382 = vst [vmem:[#allocation3 + $0x20] sm:$0xf0] %v378
      %383 = vst [vmem:[#allocation3 + $0x28] sm:$0xf0] %v379
      %v384 = vld [vmem:[#allocation2] sm:$0xff]
      %v385 = vld [vmem:[#allocation2 + $0x8] sm:$0xf]
      %v388 = vcombine.high %v384, %v384
      %389 = vrot.lane.b32.xlu0 %v384, 96
      %v390 = vpop.permute.xlu0 %389
      %391 = vrot.lane.b32.xlu0 %v388, 96
      %v392 = vpop.permute.xlu0 %391
      %393 = vrot.lane.b32.xlu0 %v385, 96
      %v394 = vpop.permute.xlu0 %393
      %vm395 = vcmask 785408
      %v396 = vsel %vm395, %v390, %v392
      %v397 = vsel %vm395, %v392, %v394
      %v400 = vsel %vm254, %v396, 0.0
      %v401 = vsel %vm255, %v397, 0.0
      %402 = vst [vmem:[#allocation3 + $0x30] sm:$0xf] %v400
      %403 = vst [vmem:[#allocation3 + $0x38] sm:$0xf] %v401
      %v404 = vld [vmem:[#allocation2] sm:$0xff]
      %v405 = vld [vmem:[#allocation2 + $0x8] sm:$0xf]
      %v408 = vcombine.low %v404, %v404
      %v409 = vcombine.low %v405, %v405
      %410 = vrot.lane.b32.xlu0 %v408, 95
      %v411 = vpop.permute.xlu0 %410
      %412 = vrot.lane.b32.xlu0 %v404, 95
      %v413 = vpop.permute.xlu0 %412
      %414 = vrot.lane.b32.xlu0 %v409, 95
      %v415 = vpop.permute.xlu0 %414
      %vm416 = vcmask 777216
      %v417 = vsel %vm416, %v411, %v413
      %v418 = vsel %vm416, %v413, %v415
      %421 = vst [vmem:[#allocation3 + $0x30] sm:$0xf0] %v417
      %422 = vst [vmem:[#allocation3 + $0x38] sm:$0xf0] %v418
      %v423 = vld [vmem:[#allocation2] sm:$0xff]
      %v424 = vld [vmem:[#allocation2 + $0x8] sm:$0xf]
      %v427 = vcombine.high %v423, %v423
      %428 = vrot.lane.b32.xlu0 %v423, 94
      %v429 = vpop.permute.xlu0 %428
      %430 = vrot.lane.b32.xlu0 %v427, 94
      %v431 = vpop.permute.xlu0 %430
      %432 = vrot.lane.b32.xlu0 %v424, 94
      %v433 = vpop.permute.xlu0 %432
      %vm434 = vcmask 769024
      %v435 = vsel %vm434, %v429, %v431
      %v436 = vsel %vm434, %v431, %v433
      %v439 = vsel %vm294, %v435, 0.0
      %v440 = vsel %vm295, %v436, 0.0
      %441 = vst [vmem:[#allocation3 + $0x40] sm:$0xf] %v439
      %442 = vst [vmem:[#allocation3 + $0x48] sm:$0xf] %v440
      %v443 = vld [vmem:[%s1] sm:$0xff]
      %v444 = vld [vmem:[#allocation3] sm:$0xff]
      %v445 = vld [vmem:[#allocation3 + $0x8] sm:$0xff]
      %v446 = vld [vmem:[#allocation3 + $0x10] sm:$0xff]
      %v447 = vld [vmem:[#allocation3 + $0x18] sm:$0xff]
      %v448 = vld [vmem:[#allocation3 + $0x20] sm:$0xff]
      %v449 = vld [vmem:[#allocation3 + $0x28] sm:$0xff]
      %v450 = vld [vmem:[#allocation3 + $0x30] sm:$0xff]
      %v451 = vld [vmem:[#allocation3 + $0x38] sm:$0xff]
      %v452 = vld [vmem:[#allocation3 + $0x40] sm:$0xf]
      %v453 = vld [vmem:[#allocation3 + $0x48] sm:$0xf]
      %vm454 = vcmask 293888
      %v456 = vsel %vm454, %v443, 0
      %vm458 = vcmask 1043456
      %v460 = vsel %vm458, %v452, 0
      %v463 = vsel %vm458, %v453, 0
      %465 = vmatprep.subr.mxu0 %v445
      %466 = vmatpush1.msra.mxu0 %v444
      %467 = vmatprep.subr.mxu0 %v447
      %468 = vmatpush1.msra.mxu0 %v446
      %469 = vmatprep.subr.mxu0 %v449
      %470 = vmatpush1.msra.mxu0 %v448
      %471 = vmatprep.subr.mxu0 %v451
      %472 = vmatpush1.msra.mxu0 %v450
      %473 = vmatprep.subr.mxu0 %v463
      %474 = vmatpush1.msra.mxu0 %v460
      %475 = vmatprep.subr.mxu0 0.0
      %476 = vmatpush1.msra.mxu0 0.0
      %477 = vmatprep.subr.mxu0 0.0
      %478 = vmatpush1.msra.mxu0 0.0
      %479 = vmatprep.subr.mxu0 0.0
      %480 = vmatpush1.msra.mxu0 0.0
      %481 = vmatprep.subr.mxu0 0.0
      %482 = vmatpush1.msra.mxu0 0.0
      %483 = vmatprep.subr.mxu0 0.0
      %484 = vmatpush1.msra.mxu0 0.0
      %485 = vmatprep.subr.mxu0 0.0
      %486 = vmatpush1.msra.mxu0 0.0
      %487 = vmatprep.subr.mxu0 0.0
      %488 = vmatpush1.msra.mxu0 0.0
      %489 = vmatprep.subr.mxu0 0.0
      %490 = vmatpush1.msra.mxu0 0.0
      %491 = vmatprep.subr.mxu0 0.0
      %492 = vmatpush1.msra.mxu0 0.0
      %493 = vmatprep.subr.mxu0 0.0
      %494 = vmatpush1.msra.mxu0 0.0
      %495 = vmatprep.subr.mxu0 0.0
      %496 = vmatpush1.msra.mxu0 0.0
      %497 = vmatprep.subr.mxu0 0.0
      %498 = vmatpush1.msra.mxu0 0.0
      %499 = vmatprep.subr.mxu0 0.0
      %500 = vmatpush1.msra.mxu0 0.0
      %501 = vmatprep.subr.mxu0 0.0
      %502 = vmatpush1.msra.mxu0 0.0
      %503 = vmatprep.subr.mxu0 0.0
      %504 = vmatpush1.msra.mxu0 0.0
      %505 = vmatprep.subr.mxu0 0.0
      %506 = vmatpush1.msra.mxu0 0.0
      %507 = vmatprep.subr.mxu0 0.0
      %508 = vmatpush1.msra.mxu0 0.0
      %509 = vmatprep.subr.mxu0 0.0
      %510 = vmatpush1.msra.mxu0 0.0
      %511 = vmatprep.subr.mxu0 0.0
      %512 = vmatpush1.msra.mxu0 0.0
      %513 = vmatprep.subr.mxu0 0.0
      %514 = vmatpush1.msra.mxu0 0.0
      %515 = vmatprep.subr.mxu0 0.0
      %516 = vmatpush1.msra.mxu0 0.0
      %517 = vmatprep.subr.mxu0 0.0
      %518 = vmatpush1.msra.mxu0 0.0
      %519 = vmatprep.subr.mxu0 0.0
      %520 = vmatpush1.msra.mxu0 0.0
      %521 = vmatprep.subr.mxu0 0.0
      %522 = vmatpush1.msra.mxu0 0.0
      %523 = vmatprep.subr.mxu0 0.0
      %524 = vmatpush1.msra.mxu0 0.0
      %525 = vmatprep.subr.mxu0 0.0
      %526 = vmatpush1.msra.mxu0 0.0
      %527 = vmatprep.subr.mxu0 0.0
      %528 = vmatpush1.msra.mxu0 0.0
      %529 = vmatprep.mubr.f32.mxu0 0.0
      %530 = vmatmul.mubr.f32.gmra.mrb[0].mxu0 %v456
      %v531 = vpop.f32.mrb[0].mxu0
      %v532 = vadd.f32 0.0, %v531
      %v533 = vpop.f32.mrb[0].mxu0
      %v534 = vadd.f32 0.0, %v533
      %535 = vdwg.mxu0
      %v536 = vld [vmem:[%s2] sm:$0xff]
      %538 = vset.pattern.permute.xlu0 0
      %539 = vperm.xlu0 %538, %v536
      %v540 = vpop.permute.xlu0 %539
      %v542 = vmul.f32 %v532, %v540
      %v543 = vmul.f32 %v534, %v540
      %v544 = vld [vmem:[%s3] sm:$0xff]
      %546 = vset.pattern.permute.xlu0 0
      %547 = vperm.xlu0 %546, %v544
      %v548 = vpop.permute.xlu0 %547
      %v550 = vadd.f32 %v542, %v548
      %v551 = vadd.f32 %v543, %v548
      %v552 = vmax.f32 %v550, 0.0
      %v553 = vmax.f32 %v551, 0.0
      %554 = vst [vmem:[%s197] sm:$0xff] %v552
      %555 = vst [vmem:[%s197 + $0x8] sm:$0xff] %v553
      %p556 = scmp.lt.s32.totalorder %s15, 1
      %s557 = scalar_select %p556, %s15, 1
      %s558 = smul.addr %s557, 2
      %s559 = smul.addr %s558, 8
      %s560 = scalar_lea.vmem %s4, %s559
      // Predicated region
      $region37: #{conv_bnr.3} parent=35 // pred_check
        %p561 = pneg %p122
      $region38: #{conv_bnr.3} parent=35 // pred_check_branch
        %563 = sbr.rel (%p561) target = $region40
      $region39: #{conv_bnr.3} parent=35 // pred_region
        _
      $region40: #{conv_bnr.3} parent=35 // pred_fallthru
        _
    $region36: #{conv_bnr.3} parent=5 // pred_fallthru
      _
    %p564 = scmp.le.s32.totalorder 2, %s10
    // Predicated region
    $region41: #{conv_bnr.3} parent=5 // pred_check
      %p565 = pneg %p564
    $region42: #{conv_bnr.3} parent=5 // pred_check_branch
      %567 = sbr.rel (%p565) target = $region44
    $region43: #{conv_bnr.3} parent=5 // pred_region
      %s568 = ssub.s32 %s10, 2
      // Predicated region
      $region45: #{conv_bnr.3} parent=43 // pred_check
        %p569 = pneg %p128
      $region46: #{conv_bnr.3} parent=43 // pred_check_branch
        %571 = sbr.rel (%p569) target = $region48
      $region47: #{conv_bnr.3} parent=43 // pred_region
        %p572 = scmp.lt.s32.totalorder %s16, 1
        %s573 = scalar_select %p572, %s16, 1
        %s574 = smul.addr %s573, 2
        %s575 = smul.addr %s574, 8
        %s576 = scalar_lea.vmem %s4, %s575
      $region48: #{conv_bnr.3} parent=43 // pred_fallthru
        _
    $region44: #{conv_bnr.3} parent=5 // pred_fallthru
      _
  $region6: #{conv_bnr.3} parent=0 // loop_footer
    %s14 = sadd.s32 1, %s10
  $region7: #{conv_bnr.3} parent=0 // loop_footer_branch
    %9 = sbr.rel target = $region3
  $region8: #{conv_bnr.3} parent=0 // loop_exit
    _

</llo_original>
